<compile_context>
chip_gen: v7x
topology: tpu7x:2x2x1
jax: 0.10.0
libtpu: 0.0.40
codegen_flags: <defaults>
</compile_context>

<pallas_src>
from functools import partial

import jax
import jax.numpy as jnp
from jax import lax
from jax.experimental import pallas as pl
from jax.experimental.pallas import tpu as pltpu

# dtype of the large read-only matmul operands (set to jnp.float32 for 1e-3 agreement
# with the f32 reference; bf16 halves their DMA bytes and doubles MXU throughput).
MXU_DTYPE = jnp.bfloat16


def _round_up(x, m):
    return (x + m - 1) // m * m


# ----------------------------------------------------------------------------
# Fused kernel: dual GRU recurrence (block-diagonal recurrent matmul) +
#               last-visit select + query head + match matmul + LayerNorm +
#               per-patient DDI quadratic term.  One grid step = one batch tile.
# ----------------------------------------------------------------------------
def fused_kernel(visit_ref, xd_ref, xp_ref,
                 wih_d_ref, wih_p_ref, bi_d_ref, bi_p_ref, bhn_d_ref, bhn_p_ref,
                 whh_ref, wq_ref, bq_ref,
                 mpnn_ref, gamma_ref, beta_ref, ddi_ref,
                 result_ref, neg_ref,
                 *, bt, emb_dim, n_steps, n_real_med, n_real_batch, ln_eps):
    B, E, M = bt, emb_dim, n_steps

    # -- hoisted input-to-hidden matmuls (bf16 x bf16 -> f32 acc), off the serial path
    gi_d_steps = []
    gi_p_steps = []
    for t in range(M):
        gi_d_steps.append(jnp.dot(xd_ref[t], wih_d_ref[...],
                                  preferred_element_type=jnp.float32) + bi_d_ref[...])
        gi_p_steps.append(jnp.dot(xp_ref[t], wih_p_ref[...],
                                  preferred_element_type=jnp.float32) + bi_p_ref[...])

    whh = whh_ref[...]                                   # (2E, 6E) f32 block-diag
    bhn_d = jnp.broadcast_to(bhn_d_ref[...], (B, E))     # hoisted bias broadcasts
    bhn_p = jnp.broadcast_to(bhn_p_ref[...], (B, E))
    last_t = visit_ref[...] - 1                          # (B, 1) int32

    h_d = jnp.zeros((B, E), jnp.float32)
    h_p = jnp.zeros((B, E), jnp.float32)
    h_last_d = jnp.zeros((B, E), jnp.float32)
    h_last_p = jnp.zeros((B, E), jnp.float32)

    # Dual GRU recurrence; both chains share one block-diagonal (B,2E)x(2E,6E)
    # matmul per step (K=256 fills a v6e/v7x MXU pass; halves serial MXU latency).
    # TODO(synk): switch to lax.fori_loop(..., unroll=True) if M grows beyond a handful.
    for t in range(M):
        gi_d = gi_d_steps[t]
        gi_p = gi_p_steps[t]
        if t == 0:
            # h0 == 0  =>  recurrent matmul is identically zero: skip it.
            r_d = jax.nn.sigmoid(gi_d[:, 0:E])
            z_d = jax.nn.sigmoid(gi_d[:, E:2 * E])
            n_d = jnp.tanh(gi_d[:, 2 * E:3 * E] + r_d * bhn_d)
            h_d = (1.0 - z_d) * n_d
            r_p = jax.nn.sigmoid(gi_p[:, 0:E])
            z_p = jax.nn.sigmoid(gi_p[:, E:2 * E])
            n_p = jnp.tanh(gi_p[:, 2 * E:3 * E] + r_p * bhn_p)
            h_p = (1.0 - z_p) * n_p
        else:
            h_cat = jnp.concatenate([h_d, h_p], axis=1)                    # (B, 2E)
            gh = jnp.dot(h_cat, whh, preferred_element_type=jnp.float32)   # (B, 6E)
            gh_d = gh[:, 0:3 * E]
            gh_p = gh[:, 3 * E:6 * E]
            r_d = jax.nn.sigmoid(gi_d[:, 0:E] + gh_d[:, 0:E])
            z_d = jax.nn.sigmoid(gi_d[:, E:2 * E] + gh_d[:, E:2 * E])
            n_d = jnp.tanh(gi_d[:, 2 * E:3 * E] + r_d * (gh_d[:, 2 * E:3 * E] + bhn_d))
            h_d = (1.0 - z_d) * n_d + z_d * h_d
            r_p = jax.nn.sigmoid(gi_p[:, 0:E] + gh_p[:, 0:E])
            z_p = jax.nn.sigmoid(gi_p[:, E:2 * E] + gh_p[:, E:2 * E])
            n_p = jnp.tanh(gi_p[:, 2 * E:3 * E] + r_p * (gh_p[:, 2 * E:3 * E] + bhn_p))
            h_p = (1.0 - z_p) * n_p + z_p * h_p
        sel = last_t == t                                 # (B, 1) bool
        h_last_d = jnp.where(sel, h_d, h_last_d)
        h_last_p = jnp.where(sel, h_p, h_last_p)

    # -- query = Linear(ReLU(cat(o1, o2))): one (B,2E)x(2E,E) MXU pass ----------
    wq = wq_ref[...]
    pr = jnp.concatenate([jnp.maximum(h_last_d, 0.0),
                          jnp.maximum(h_last_p, 0.0)], axis=1)             # (B, 2E)
    query = jnp.dot(pr.astype(wq.dtype), wq,
                    preferred_element_type=jnp.float32) + bq_ref[...]

    # normed_query = |q|/(1+|q|) * q/|q| == q / (1 + |q|)   (exact divide, one-shot)
    qnorm = jnp.sqrt(jnp.sum(query * query, axis=1, keepdims=True))
    normed_query = query / (1.0 + qnorm)

    # match = normed_query @ normed_MPNN_emb.T  (row-norm hoisted to param prep)
    mpnn = mpnn_ref[...]
    match = lax.dot_general(normed_query.astype(mpnn.dtype), mpnn,
                            (((1,), (1,)), ((), ())),
                            preferred_element_type=jnp.float32)            # (B, N_pad)

    # LayerNorm over the REAL medication columns (padded cols of match are exactly 0).
    n_pad = match.shape[1]
    col = lax.broadcasted_iota(jnp.int32, (1, n_pad), 1)
    lane_mask = (col < n_real_med).astype(jnp.float32)
    inv_n = 1.0 / float(n_real_med)
    mu = jnp.sum(match, axis=-1, keepdims=True) * inv_n
    diff = (match - mu) * lane_mask
    var = jnp.sum(diff * diff, axis=-1, keepdims=True) * inv_n
    att = diff * lax.rsqrt(var + ln_eps) * gamma_ref[...] + beta_ref[...]
    result_ref[...] = att

    # batch_neg partials = 0.0005 * sigmoid(att)^T A_ddi sigmoid(att) per REAL row.
    # (padded med rows/cols of A_ddi are zero; padded batch rows masked out here)
    p = jax.nn.sigmoid(att)
    pa = jnp.dot(p, ddi_ref[...], preferred_element_type=jnp.float32)
    row = lax.broadcasted_iota(jnp.int32, (B, 1), 0)
    valid = jnp.minimum(jnp.maximum(n_real_batch - pl.program_id(0) * B, 0), B)
    rmask = (row < valid).astype(jnp.float32)
    row_neg = 0.0005 * jnp.sum(p * pa, axis=1, keepdims=True) * rmask      # (B, 1)
    neg_ref[...] = jnp.broadcast_to(row_neg, (B, 128))                     # lane-dense store


# ----------------------------------------------------------------------------
# One-time parameter preparation (bias folding, block-diag W_hh, mpnn norm,
# lane padding, bf16 cast of the read-only MXU operands).
# ----------------------------------------------------------------------------
def prepare_params(params, n_med, n_pad, mxu_dtype=MXU_DTYPE):
    E = params["wq_t"].shape[1]

    def fold_bias(gru):
        wih_t, whh_t, bih, bhh = gru
        bi = bih + jnp.concatenate(
            [bhh[:, :2 * E], jnp.zeros((1, E), jnp.float32)], axis=1)
        bhn = bhh[:, 2 * E:]
        return wih_t, whh_t, bi, bhn

    wih_d, whh_d, bi_d, bhn_d = fold_bias(params["gru_diag"])
    wih_p, whh_p, bi_p, bhn_p = fold_bias(params["gru_pro"])

    # Block-diagonal recurrent weight:  [h_d | h_p] @ W = [h_d@whh_d | h_p@whh_p]
    zeros = jnp.zeros((E, 3 * E), jnp.float32)
    whh_block = jnp.concatenate(
        [jnp.concatenate([whh_d, zeros], axis=1),
         jnp.concatenate([zeros, whh_p], axis=1)], axis=0)      # (2E, 6E) f32

    mpnn = params["mpnn_emb"]
    normed_mpnn = mpnn / jnp.sqrt(jnp.sum(mpnn * mpnn, axis=1, keepdims=True))

    pad = n_pad - n_med
    return {
        "emb_diag": params["emb_diag"],
        "emb_pro": params["emb_pro"],
        "wih_d": wih_d.astype(mxu_dtype),
        "wih_p": wih_p.astype(mxu_dtype),
        "bi_d": bi_d, "bi_p": bi_p,
        "bhn_d": bhn_d, "bhn_p": bhn_p,
        "whh_block": whh_block,                                  # f32: serial path
        "wq_t": params["wq_t"].astype(mxu_dtype),                # (2E, E)
        "bq": params["bq"],
        "mpnn": jnp.pad(normed_mpnn, ((0, pad), (0, 0))).astype(mxu_dtype),
        "gamma": jnp.pad(params["ln_gamma"], ((0, 0), (0, pad))),
        "beta": jnp.pad(params["ln_beta"], ((0, 0), (0, pad))),
        "ddi": jnp.pad(params["ddi_adj"], ((0, pad), (0, pad))),  # f32, exact 0/1
    }


# ----------------------------------------------------------------------------
# Forward: plain-JAX embedding gather+sum glue, then the single fused kernel.
# ----------------------------------------------------------------------------
@partial(jax.jit, static_argnames=("n_med",))
def model_forward(prep, diag, pro, visit_len, n_med):
    B, M = diag.shape[:2]
    E = prep["emb_diag"].shape[1]
    n_pad = prep["mpnn"].shape[0]
    mxu_dtype = prep["wih_d"].dtype

    # batch tiling: pad to the sublane tile (8) and tile up to 128 rows per grid step
    BT = min(_round_up(B, 8), 128)
    B_pad = _round_up(B, BT)
    n_bt = B_pad // BT

    # embedding gather + code-sum (padding row of each table is zero); dropout = eval id
    xd = jnp.take(prep["emb_diag"], diag, axis=0).sum(-2)     # (B, M, E) f32
    xp = jnp.take(prep["emb_pro"], pro, axis=0).sum(-2)
    # time-major (M, B_pad, E), batch padded, cast for the MXU
    xd = jnp.pad(xd.transpose(1, 0, 2), ((0, 0), (0, B_pad - B), (0, 0))).astype(mxu_dtype)
    xp = jnp.pad(xp.transpose(1, 0, 2), ((0, 0), (0, B_pad - B), (0, 0))).astype(mxu_dtype)
    # padded rows get visit_len = 0 -> never selected -> h_last stays zero
    vlen = jnp.pad(visit_len.reshape(B, 1).astype(jnp.int32), ((0, B_pad - B), (0, 0)))

    weights = (prep["wih_d"], prep["wih_p"], prep["bi_d"], prep["bi_p"],
               prep["bhn_d"], prep["bhn_p"], prep["whh_block"], prep["wq_t"],
               prep["bq"], prep["mpnn"], prep["gamma"], prep["beta"], prep["ddi"])

    in_specs = (
        [pl.BlockSpec((BT, 1), lambda i: (i, 0)),
         pl.BlockSpec((M, BT, E), lambda i: (0, i, 0)),
         pl.BlockSpec((M, BT, E), lambda i: (0, i, 0))]
        # constants: whole-array, single-buffered VMEM residents (no dead double buffer)
        + [pl.BlockSpec(memory_space=pltpu.MemorySpace.VMEM) for _ in weights]
    )

    result_pad, neg_rows = pl.pallas_call(
        partial(fused_kernel, bt=BT, emb_dim=E, n_steps=M,
                n_real_med=n_med, n_real_batch=B, ln_eps=1e-5),
        grid=(n_bt,),
        in_specs=in_specs,
        out_specs=[
            pl.BlockSpec((BT, n_pad), lambda i: (i, 0)),
            pl.BlockSpec((BT, 128), lambda i: (i, 0)),
        ],
        out_shape=[
            jax.ShapeDtypeStruct((B_pad, n_pad), jnp.float32),
            jax.ShapeDtypeStruct((B_pad, 128), jnp.float32),
        ],
        compiler_params=pltpu.CompilerParams(dimension_semantics=("parallel",)),
    )(vlen, xd, xp, *weights)

    batch_neg = jnp.sum(neg_rows[:, 0])
    return result_pad[:B, :n_med], batch_neg, 0


# ----------------------------------------------------------------------------
# Pure-JAX reference (mirrors the PyTorch forward) for a sanity check.
# ----------------------------------------------------------------------------
def embed_sum(table, idx):
    return jnp.take(table, idx, axis=0).sum(axis=-2)


def reference_forward(params, diag, pro, visit_len):
    def gru_ref(x, wih_t, whh_t, bih, bhh):
        B, M, E = x.shape
        h = jnp.zeros((B, E), jnp.float32)
        outs = []
        for t in range(M):
            gi = x[:, t, :] @ wih_t + bih
            gh = h @ whh_t + bhh
            r = jax.nn.sigmoid(gi[:, :E] + gh[:, :E])
            z = jax.nn.sigmoid(gi[:, E:2 * E] + gh[:, E:2 * E])
            n = jnp.tanh(gi[:, 2 * E:] + r * gh[:, 2 * E:])
            h = (1 - z) * n + z * h
            outs.append(h)
        return jnp.stack(outs, axis=1)

    d = embed_sum(params["emb_diag"], diag)
    p = embed_sum(params["emb_pro"], pro)
    o1 = gru_ref(d, *params["gru_diag"])
    o2 = gru_ref(p, *params["gru_pro"])
    b = jnp.arange(diag.shape[0])
    o1l, o2l = o1[b, visit_len - 1], o2[b, visit_len - 1]
    pr = jnp.concatenate([o1l, o2l], -1)
    query = jnp.maximum(pr, 0.0) @ params["wq_t"] + params["bq"]
    qn = jnp.linalg.norm(query, axis=1, keepdims=True)
    nq = qn / (1 + qn) * (query / qn)
    m = params["mpnn_emb"]
    nm = m / jnp.linalg.norm(m, axis=1, keepdims=True)
    match = nq @ nm.T
    mu = match.mean(-1, keepdims=True)
    var = ((match - mu) ** 2).mean(-1, keepdims=True)
    att = (match - mu) / jnp.sqrt(var + 1e-5) * params["ln_gamma"] + params["ln_beta"]
    prob = jax.nn.sigmoid(att)
    neg = 0.0005 * jnp.einsum("bi,ij,bj->", prob, params["ddi_adj"], prob)
    return att, neg


# ----------------------------------------------------------------------------
if __name__ == "__main__":
    # small deterministic configuration
    B, M = 4, 2                      # batch, max visits (MaxVisit=2 default)
    N_DIAG_CODES, N_PRO_CODES = 6, 5
    VOC = (30, 25, 16)               # (diag vocab, pro vocab, num medications)
    E = 128                          # emb_dim (lane-aligned)
    N_MED = VOC[2]
    N_PAD = _round_up(N_MED, 128)    # lane-dense medication axis inside the kernel

    key = jax.random.PRNGKey(0)
    ks = jax.random.split(key, 16)

    def init(k, shape, scale=0.1):
        return (scale * jax.random.normal(k, shape)).astype(jnp.float32)

    # embeddings (last row = padding index -> zero)
    emb_diag = init(ks[0], (VOC[0] + 1, E)).at[VOC[0]].set(0.0)
    emb_pro = init(ks[1], (VOC[1] + 1, E)).at[VOC[1]].set(0.0)

    def gru_params(k):
        k1, k2, k3, k4 = jax.random.split(k, 4)
        return (init(k1, (E, 3 * E)),        # W_ih.T
                init(k2, (E, 3 * E)),        # W_hh.T
                init(k3, (1, 3 * E)),        # b_ih
                init(k4, (1, 3 * E)))        # b_hh

    params = {
        "emb_diag": emb_diag,
        "emb_pro": emb_pro,
        "gru_diag": gru_params(ks[2]),
        "gru_pro": gru_params(ks[3]),
        "wq_t": init(ks[4], (2 * E, E)),     # query Linear weight, transposed
        "bq": init(ks[5], (1, E)),
        "mpnn_emb": init(ks[6], (N_MED, E), scale=1.0) + 0.5,  # molecular_network stand-in
        "ln_gamma": jnp.ones((1, N_MED), jnp.float32),
        "ln_beta": jnp.zeros((1, N_MED), jnp.float32),
    }
    # symmetric 0/1 DDI adjacency, zero diagonal
    ddi = (jax.random.uniform(ks[7], (N_MED, N_MED)) < 0.2).astype(jnp.float32)
    ddi = jnp.clip(ddi + ddi.T, 0.0, 1.0) * (1.0 - jnp.eye(N_MED, dtype=jnp.float32))
    params["ddi_adj"] = ddi

    # inputs (code indices may take the padding value == vocab size)
    diag = jax.random.randint(ks[8], (B, M, N_DIAG_CODES), 0, VOC[0] + 1).astype(jnp.int32)
    pro = jax.random.randint(ks[9], (B, M, N_PRO_CODES), 0, VOC[1] + 1).astype(jnp.int32)
    visit_len = jax.random.randint(ks[10], (B,), 1, M + 1).astype(jnp.int32)

    prep = prepare_params(params, N_MED, N_PAD)          # one-time constant prep
    result, batch_neg, _ = model_forward(prep, diag, pro, visit_len, N_MED)
    jax.block_until_ready((result, batch_neg))

    ref_result, ref_neg = reference_forward(params, diag, pro, visit_len)
    # bf16 MXU operands: agreement vs the f32 reference is ~1e-3..1e-2 after the
    # LayerNorm; set MXU_DTYPE = jnp.float32 above to recover 1e-3 agreement.
    tol = 1e-3 if MXU_DTYPE == jnp.float32 else 2e-2
    assert result.shape == (B, N_MED)
    assert jnp.allclose(result, ref_result, rtol=tol, atol=tol)
    assert jnp.allclose(batch_neg, ref_neg, rtol=tol, atol=tol)

    print("KERNEL_OK")
</pallas_src>

<mosaic_0001>
module attributes {stable_mosaic.version = 11 : i64} {
  func.func @fused_kernel(%arg0: i32, %arg1: memref<8x1xi32, #tpu.memory_space<vmem>>, %arg2: memref<2x8x128xbf16, #tpu.memory_space<vmem>>, %arg3: memref<2x8x128xbf16, #tpu.memory_space<vmem>>, %arg4: memref<128x384xbf16, #tpu.memory_space<vmem>>, %arg5: memref<128x384xbf16, #tpu.memory_space<vmem>>, %arg6: memref<1x384xf32, #tpu.memory_space<vmem>>, %arg7: memref<1x384xf32, #tpu.memory_space<vmem>>, %arg8: memref<1x128xf32, #tpu.memory_space<vmem>>, %arg9: memref<1x128xf32, #tpu.memory_space<vmem>>, %arg10: memref<256x768xf32, #tpu.memory_space<vmem>>, %arg11: memref<256x128xbf16, #tpu.memory_space<vmem>>, %arg12: memref<1x128xf32, #tpu.memory_space<vmem>>, %arg13: memref<128x128xbf16, #tpu.memory_space<vmem>>, %arg14: memref<1x128xf32, #tpu.memory_space<vmem>>, %arg15: memref<1x128xf32, #tpu.memory_space<vmem>>, %arg16: memref<128x128xf32, #tpu.memory_space<vmem>>, %arg17: memref<8x128xf32, #tpu.memory_space<vmem>>, %arg18: memref<8x128xf32, #tpu.memory_space<vmem>>) attributes {dimension_semantics = [#tpu.dimension_semantics<parallel>], iteration_bounds = array<i64: 1>, scalar_prefetch = 0 : i64, scratch_operands = 0 : i64, tpu.core_type = #tpu.core_type<tc>, window_params = [{transform_indices = @transform_0, window_bounds = array<i64: 8, 1>}, {transform_indices = @transform_1, window_bounds = array<i64: 2, 8, 128>}, {transform_indices = @transform_2, window_bounds = array<i64: 2, 8, 128>}, {pipeline_mode = #tpu.pipeline_mode<synchronous>, transform_indices = @transform_3, window_bounds = array<i64: 128, 384>}, {pipeline_mode = #tpu.pipeline_mode<synchronous>, transform_indices = @transform_4, window_bounds = array<i64: 128, 384>}, {pipeline_mode = #tpu.pipeline_mode<synchronous>, transform_indices = @transform_5, window_bounds = array<i64: 1, 384>}, {pipeline_mode = #tpu.pipeline_mode<synchronous>, transform_indices = @transform_6, window_bounds = array<i64: 1, 384>}, {pipeline_mode = #tpu.pipeline_mode<synchronous>, transform_indices = @transform_7, window_bounds = array<i64: 1, 128>}, {pipeline_mode = #tpu.pipeline_mode<synchronous>, transform_indices = @transform_8, window_bounds = array<i64: 1, 128>}, {pipeline_mode = #tpu.pipeline_mode<synchronous>, transform_indices = @transform_9, window_bounds = array<i64: 256, 768>}, {pipeline_mode = #tpu.pipeline_mode<synchronous>, transform_indices = @transform_10, window_bounds = array<i64: 256, 128>}, {pipeline_mode = #tpu.pipeline_mode<synchronous>, transform_indices = @transform_11, window_bounds = array<i64: 1, 128>}, {pipeline_mode = #tpu.pipeline_mode<synchronous>, transform_indices = @transform_12, window_bounds = array<i64: 128, 128>}, {pipeline_mode = #tpu.pipeline_mode<synchronous>, transform_indices = @transform_13, window_bounds = array<i64: 1, 128>}, {pipeline_mode = #tpu.pipeline_mode<synchronous>, transform_indices = @transform_14, window_bounds = array<i64: 1, 128>}, {pipeline_mode = #tpu.pipeline_mode<synchronous>, transform_indices = @transform_15, window_bounds = array<i64: 128, 128>}, {transform_indices = @transform_16, window_bounds = array<i64: 8, 128>}, {transform_indices = @transform_17, window_bounds = array<i64: 8, 128>}]} {
    %c0 = arith.constant 0 : index
    %c0_0 = arith.constant 0 : index
    %c0_1 = arith.constant 0 : index
    %0 = vector.load %arg2[%c0, %c0_0, %c0_1] : memref<2x8x128xbf16, #tpu.memory_space<vmem>>, vector<1x8x128xbf16>
    %1 = vector.shape_cast %0 : vector<1x8x128xbf16> to vector<8x128xbf16>
    %c0_2 = arith.constant 0 : index
    %c0_3 = arith.constant 0 : index
    %2 = vector.load %arg4[%c0_2, %c0_3] : memref<128x384xbf16, #tpu.memory_space<vmem>>, vector<128x384xbf16>
    %cst = arith.constant dense<0.000000e+00> : vector<8x384xf32>
    %3 = tpu.matmul %1, %2, %cst {dimension_numbers = #tpu.dot_dimension_numbers<[1], [0], [0], [1], [0, 0, 1, 1], [], []>} : vector<8x128xbf16>, vector<128x384xbf16>, vector<8x384xf32> -> vector<8x384xf32>
    %c0_4 = arith.constant 0 : index
    %c0_5 = arith.constant 0 : index
    %4 = vector.load %arg6[%c0_4, %c0_5] : memref<1x384xf32, #tpu.memory_space<vmem>>, vector<1x384xf32>
    %5 = vector.broadcast %4 : vector<1x384xf32> to vector<8x384xf32>
    %6 = arith.addf %3, %5 : vector<8x384xf32>
    %c0_6 = arith.constant 0 : index
    %c0_7 = arith.constant 0 : index
    %c0_8 = arith.constant 0 : index
    %7 = vector.load %arg3[%c0_6, %c0_7, %c0_8] : memref<2x8x128xbf16, #tpu.memory_space<vmem>>, vector<1x8x128xbf16>
    %8 = vector.shape_cast %7 : vector<1x8x128xbf16> to vector<8x128xbf16>
    %c0_9 = arith.constant 0 : index
    %c0_10 = arith.constant 0 : index
    %9 = vector.load %arg5[%c0_9, %c0_10] : memref<128x384xbf16, #tpu.memory_space<vmem>>, vector<128x384xbf16>
    %cst_11 = arith.constant dense<0.000000e+00> : vector<8x384xf32>
    %10 = tpu.matmul %8, %9, %cst_11 {dimension_numbers = #tpu.dot_dimension_numbers<[1], [0], [0], [1], [0, 0, 1, 1], [], []>} : vector<8x128xbf16>, vector<128x384xbf16>, vector<8x384xf32> -> vector<8x384xf32>
    %c0_12 = arith.constant 0 : index
    %c0_13 = arith.constant 0 : index
    %11 = vector.load %arg7[%c0_12, %c0_13] : memref<1x384xf32, #tpu.memory_space<vmem>>, vector<1x384xf32>
    %12 = vector.broadcast %11 : vector<1x384xf32> to vector<8x384xf32>
    %13 = arith.addf %10, %12 : vector<8x384xf32>
    %c1 = arith.constant 1 : index
    %c0_14 = arith.constant 0 : index
    %c0_15 = arith.constant 0 : index
    %14 = vector.load %arg2[%c1, %c0_14, %c0_15] : memref<2x8x128xbf16, #tpu.memory_space<vmem>>, vector<1x8x128xbf16>
    %15 = vector.shape_cast %14 : vector<1x8x128xbf16> to vector<8x128xbf16>
    %c0_16 = arith.constant 0 : index
    %c0_17 = arith.constant 0 : index
    %16 = vector.load %arg4[%c0_16, %c0_17] : memref<128x384xbf16, #tpu.memory_space<vmem>>, vector<128x384xbf16>
    %cst_18 = arith.constant dense<0.000000e+00> : vector<8x384xf32>
    %17 = tpu.matmul %15, %16, %cst_18 {dimension_numbers = #tpu.dot_dimension_numbers<[1], [0], [0], [1], [0, 0, 1, 1], [], []>} : vector<8x128xbf16>, vector<128x384xbf16>, vector<8x384xf32> -> vector<8x384xf32>
    %c0_19 = arith.constant 0 : index
    %c0_20 = arith.constant 0 : index
    %18 = vector.load %arg6[%c0_19, %c0_20] : memref<1x384xf32, #tpu.memory_space<vmem>>, vector<1x384xf32>
    %19 = vector.broadcast %18 : vector<1x384xf32> to vector<8x384xf32>
    %20 = arith.addf %17, %19 : vector<8x384xf32>
    %c1_21 = arith.constant 1 : index
    %c0_22 = arith.constant 0 : index
    %c0_23 = arith.constant 0 : index
    %21 = vector.load %arg3[%c1_21, %c0_22, %c0_23] : memref<2x8x128xbf16, #tpu.memory_space<vmem>>, vector<1x8x128xbf16>
    %22 = vector.shape_cast %21 : vector<1x8x128xbf16> to vector<8x128xbf16>
    %c0_24 = arith.constant 0 : index
    %c0_25 = arith.constant 0 : index
    %23 = vector.load %arg5[%c0_24, %c0_25] : memref<128x384xbf16, #tpu.memory_space<vmem>>, vector<128x384xbf16>
    %cst_26 = arith.constant dense<0.000000e+00> : vector<8x384xf32>
    %24 = tpu.matmul %22, %23, %cst_26 {dimension_numbers = #tpu.dot_dimension_numbers<[1], [0], [0], [1], [0, 0, 1, 1], [], []>} : vector<8x128xbf16>, vector<128x384xbf16>, vector<8x384xf32> -> vector<8x384xf32>
    %c0_27 = arith.constant 0 : index
    %c0_28 = arith.constant 0 : index
    %25 = vector.load %arg7[%c0_27, %c0_28] : memref<1x384xf32, #tpu.memory_space<vmem>>, vector<1x384xf32>
    %26 = vector.broadcast %25 : vector<1x384xf32> to vector<8x384xf32>
    %27 = arith.addf %24, %26 : vector<8x384xf32>
    %c0_29 = arith.constant 0 : index
    %c0_30 = arith.constant 0 : index
    %28 = vector.load %arg10[%c0_29, %c0_30] : memref<256x768xf32, #tpu.memory_space<vmem>>, vector<256x768xf32>
    %c0_31 = arith.constant 0 : index
    %c0_32 = arith.constant 0 : index
    %29 = vector.load %arg8[%c0_31, %c0_32] : memref<1x128xf32, #tpu.memory_space<vmem>>, vector<1x128xf32>
    %30 = vector.shape_cast %29 : vector<1x128xf32> to vector<1x128xf32>
    %31 = vector.broadcast %30 : vector<1x128xf32> to vector<8x128xf32>
    %c0_33 = arith.constant 0 : index
    %c0_34 = arith.constant 0 : index
    %32 = vector.load %arg9[%c0_33, %c0_34] : memref<1x128xf32, #tpu.memory_space<vmem>>, vector<1x128xf32>
    %33 = vector.shape_cast %32 : vector<1x128xf32> to vector<1x128xf32>
    %34 = vector.broadcast %33 : vector<1x128xf32> to vector<8x128xf32>
    %c0_35 = arith.constant 0 : index
    %c0_36 = arith.constant 0 : index
    %35 = vector.load %arg1[%c0_35, %c0_36] : memref<8x1xi32, #tpu.memory_space<vmem>>, vector<8x1xi32>
    %c1_i32 = arith.constant 1 : i32
    %36 = vector.broadcast %c1_i32 : i32 to vector<8x1xi32>
    %37 = arith.subi %35, %36 : vector<8x1xi32>
    %cst_37 = arith.constant 0.000000e+00 : f32
    %38 = vector.broadcast %cst_37 : f32 to vector<8x128xf32>
    %cst_38 = arith.constant 0.000000e+00 : f32
    %39 = vector.broadcast %cst_38 : f32 to vector<8x128xf32>
    %40 = vector.extract_strided_slice %6 {offsets = [0, 0], sizes = [8, 128], strides = [1, 1]} : vector<8x384xf32> to vector<8x128xf32>
    %41 = arith.negf %40 : vector<8x128xf32>
    %42 = math.exp %41 : vector<8x128xf32>
    %cst_39 = arith.constant 1.000000e+00 : f32
    %43 = vector.broadcast %cst_39 : f32 to vector<8x128xf32>
    %44 = arith.addf %43, %42 : vector<8x128xf32>
    %45 = arith.divf %43, %44 : vector<8x128xf32>
    %46 = vector.extract_strided_slice %6 {offsets = [0, 128], sizes = [8, 128], strides = [1, 1]} : vector<8x384xf32> to vector<8x128xf32>
    %47 = arith.negf %46 : vector<8x128xf32>
    %48 = math.exp %47 : vector<8x128xf32>
    %cst_40 = arith.constant 1.000000e+00 : f32
    %49 = vector.broadcast %cst_40 : f32 to vector<8x128xf32>
    %50 = arith.addf %49, %48 : vector<8x128xf32>
    %51 = arith.divf %49, %50 : vector<8x128xf32>
    %52 = vector.extract_strided_slice %6 {offsets = [0, 256], sizes = [8, 128], strides = [1, 1]} : vector<8x384xf32> to vector<8x128xf32>
    %53 = arith.mulf %45, %31 : vector<8x128xf32>
    %54 = arith.addf %52, %53 : vector<8x128xf32>
    %55 = math.tanh %54 : vector<8x128xf32>
    %cst_41 = arith.constant 1.000000e+00 : f32
    %56 = vector.broadcast %cst_41 : f32 to vector<8x128xf32>
    %57 = arith.subf %56, %51 : vector<8x128xf32>
    %58 = arith.mulf %57, %55 : vector<8x128xf32>
    %59 = vector.extract_strided_slice %13 {offsets = [0, 0], sizes = [8, 128], strides = [1, 1]} : vector<8x384xf32> to vector<8x128xf32>
    %60 = arith.negf %59 : vector<8x128xf32>
    %61 = math.exp %60 : vector<8x128xf32>
    %cst_42 = arith.constant 1.000000e+00 : f32
    %62 = vector.broadcast %cst_42 : f32 to vector<8x128xf32>
    %63 = arith.addf %62, %61 : vector<8x128xf32>
    %64 = arith.divf %62, %63 : vector<8x128xf32>
    %65 = vector.extract_strided_slice %13 {offsets = [0, 128], sizes = [8, 128], strides = [1, 1]} : vector<8x384xf32> to vector<8x128xf32>
    %66 = arith.negf %65 : vector<8x128xf32>
    %67 = math.exp %66 : vector<8x128xf32>
    %cst_43 = arith.constant 1.000000e+00 : f32
    %68 = vector.broadcast %cst_43 : f32 to vector<8x128xf32>
    %69 = arith.addf %68, %67 : vector<8x128xf32>
    %70 = arith.divf %68, %69 : vector<8x128xf32>
    %71 = vector.extract_strided_slice %13 {offsets = [0, 256], sizes = [8, 128], strides = [1, 1]} : vector<8x384xf32> to vector<8x128xf32>
    %72 = arith.mulf %64, %34 : vector<8x128xf32>
    %73 = arith.addf %71, %72 : vector<8x128xf32>
    %74 = math.tanh %73 : vector<8x128xf32>
    %cst_44 = arith.constant 1.000000e+00 : f32
    %75 = vector.broadcast %cst_44 : f32 to vector<8x128xf32>
    %76 = arith.subf %75, %70 : vector<8x128xf32>
    %77 = arith.mulf %76, %74 : vector<8x128xf32>
    %c0_i32 = arith.constant 0 : i32
    %78 = vector.broadcast %c0_i32 : i32 to vector<8x1xi32>
    %79 = arith.cmpi eq, %37, %78 : vector<8x1xi32>
    %80 = vector.shape_cast %79 : vector<8x1xi1> to vector<8x1xi1>
    %81 = vector.broadcast %80 : vector<8x1xi1> to vector<8x128xi1>
    %82 = arith.select %81, %58, %38 : vector<8x128xi1>, vector<8x128xf32>
    %83 = vector.shape_cast %79 : vector<8x1xi1> to vector<8x1xi1>
    %84 = vector.broadcast %83 : vector<8x1xi1> to vector<8x128xi1>
    %85 = arith.select %84, %77, %39 : vector<8x128xi1>, vector<8x128xf32>
    %86 = tpu.concatenate %58, %77 in 1 : vector<8x128xf32>, vector<8x128xf32> -> vector<8x256xf32>
    %cst_45 = arith.constant dense<0.000000e+00> : vector<8x768xf32>
    %87 = tpu.matmul %86, %28, %cst_45 {dimension_numbers = #tpu.dot_dimension_numbers<[1], [0], [0], [1], [0, 0, 1, 1], [], []>} : vector<8x256xf32>, vector<256x768xf32>, vector<8x768xf32> -> vector<8x768xf32>
    %88 = vector.extract_strided_slice %87 {offsets = [0, 0], sizes = [8, 384], strides = [1, 1]} : vector<8x768xf32> to vector<8x384xf32>
    %89 = vector.extract_strided_slice %87 {offsets = [0, 384], sizes = [8, 384], strides = [1, 1]} : vector<8x768xf32> to vector<8x384xf32>
    %90 = vector.extract_strided_slice %20 {offsets = [0, 0], sizes = [8, 128], strides = [1, 1]} : vector<8x384xf32> to vector<8x128xf32>
    %91 = vector.extract_strided_slice %88 {offsets = [0, 0], sizes = [8, 128], strides = [1, 1]} : vector<8x384xf32> to vector<8x128xf32>
    %92 = arith.addf %90, %91 : vector<8x128xf32>
    %93 = arith.negf %92 : vector<8x128xf32>
    %94 = math.exp %93 : vector<8x128xf32>
    %cst_46 = arith.constant 1.000000e+00 : f32
    %95 = vector.broadcast %cst_46 : f32 to vector<8x128xf32>
    %96 = arith.addf %95, %94 : vector<8x128xf32>
    %97 = arith.divf %95, %96 : vector<8x128xf32>
    %98 = vector.extract_strided_slice %20 {offsets = [0, 128], sizes = [8, 128], strides = [1, 1]} : vector<8x384xf32> to vector<8x128xf32>
    %99 = vector.extract_strided_slice %88 {offsets = [0, 128], sizes = [8, 128], strides = [1, 1]} : vector<8x384xf32> to vector<8x128xf32>
    %100 = arith.addf %98, %99 : vector<8x128xf32>
    %101 = arith.negf %100 : vector<8x128xf32>
    %102 = math.exp %101 : vector<8x128xf32>
    %cst_47 = arith.constant 1.000000e+00 : f32
    %103 = vector.broadcast %cst_47 : f32 to vector<8x128xf32>
    %104 = arith.addf %103, %102 : vector<8x128xf32>
    %105 = arith.divf %103, %104 : vector<8x128xf32>
    %106 = vector.extract_strided_slice %20 {offsets = [0, 256], sizes = [8, 128], strides = [1, 1]} : vector<8x384xf32> to vector<8x128xf32>
    %107 = vector.extract_strided_slice %88 {offsets = [0, 256], sizes = [8, 128], strides = [1, 1]} : vector<8x384xf32> to vector<8x128xf32>
    %108 = arith.addf %107, %31 : vector<8x128xf32>
    %109 = arith.mulf %97, %108 : vector<8x128xf32>
    %110 = arith.addf %106, %109 : vector<8x128xf32>
    %111 = math.tanh %110 : vector<8x128xf32>
    %cst_48 = arith.constant 1.000000e+00 : f32
    %112 = vector.broadcast %cst_48 : f32 to vector<8x128xf32>
    %113 = arith.subf %112, %105 : vector<8x128xf32>
    %114 = arith.mulf %113, %111 : vector<8x128xf32>
    %115 = arith.mulf %105, %58 : vector<8x128xf32>
    %116 = arith.addf %114, %115 : vector<8x128xf32>
    %117 = vector.extract_strided_slice %27 {offsets = [0, 0], sizes = [8, 128], strides = [1, 1]} : vector<8x384xf32> to vector<8x128xf32>
    %118 = vector.extract_strided_slice %89 {offsets = [0, 0], sizes = [8, 128], strides = [1, 1]} : vector<8x384xf32> to vector<8x128xf32>
    %119 = arith.addf %117, %118 : vector<8x128xf32>
    %120 = arith.negf %119 : vector<8x128xf32>
    %121 = math.exp %120 : vector<8x128xf32>
    %cst_49 = arith.constant 1.000000e+00 : f32
    %122 = vector.broadcast %cst_49 : f32 to vector<8x128xf32>
    %123 = arith.addf %122, %121 : vector<8x128xf32>
    %124 = arith.divf %122, %123 : vector<8x128xf32>
    %125 = vector.extract_strided_slice %27 {offsets = [0, 128], sizes = [8, 128], strides = [1, 1]} : vector<8x384xf32> to vector<8x128xf32>
    %126 = vector.extract_strided_slice %89 {offsets = [0, 128], sizes = [8, 128], strides = [1, 1]} : vector<8x384xf32> to vector<8x128xf32>
    %127 = arith.addf %125, %126 : vector<8x128xf32>
    %128 = arith.negf %127 : vector<8x128xf32>
    %129 = math.exp %128 : vector<8x128xf32>
    %cst_50 = arith.constant 1.000000e+00 : f32
    %130 = vector.broadcast %cst_50 : f32 to vector<8x128xf32>
    %131 = arith.addf %130, %129 : vector<8x128xf32>
    %132 = arith.divf %130, %131 : vector<8x128xf32>
    %133 = vector.extract_strided_slice %27 {offsets = [0, 256], sizes = [8, 128], strides = [1, 1]} : vector<8x384xf32> to vector<8x128xf32>
    %134 = vector.extract_strided_slice %89 {offsets = [0, 256], sizes = [8, 128], strides = [1, 1]} : vector<8x384xf32> to vector<8x128xf32>
    %135 = arith.addf %134, %34 : vector<8x128xf32>
    %136 = arith.mulf %124, %135 : vector<8x128xf32>
    %137 = arith.addf %133, %136 : vector<8x128xf32>
    %138 = math.tanh %137 : vector<8x128xf32>
    %cst_51 = arith.constant 1.000000e+00 : f32
    %139 = vector.broadcast %cst_51 : f32 to vector<8x128xf32>
    %140 = arith.subf %139, %132 : vector<8x128xf32>
    %141 = arith.mulf %140, %138 : vector<8x128xf32>
    %142 = arith.mulf %132, %77 : vector<8x128xf32>
    %143 = arith.addf %141, %142 : vector<8x128xf32>
    %c1_i32_52 = arith.constant 1 : i32
    %144 = vector.broadcast %c1_i32_52 : i32 to vector<8x1xi32>
    %145 = arith.cmpi eq, %37, %144 : vector<8x1xi32>
    %146 = vector.shape_cast %145 : vector<8x1xi1> to vector<8x1xi1>
    %147 = vector.broadcast %146 : vector<8x1xi1> to vector<8x128xi1>
    %148 = arith.select %147, %116, %82 : vector<8x128xi1>, vector<8x128xf32>
    %149 = vector.shape_cast %145 : vector<8x1xi1> to vector<8x1xi1>
    %150 = vector.broadcast %149 : vector<8x1xi1> to vector<8x128xi1>
    %151 = arith.select %150, %143, %85 : vector<8x128xi1>, vector<8x128xf32>
    %c0_53 = arith.constant 0 : index
    %c0_54 = arith.constant 0 : index
    %152 = vector.load %arg11[%c0_53, %c0_54] : memref<256x128xbf16, #tpu.memory_space<vmem>>, vector<256x128xbf16>
    %cst_55 = arith.constant 0.000000e+00 : f32
    %153 = vector.broadcast %cst_55 : f32 to vector<8x128xf32>
    %154 = arith.maximumf %148, %153 : vector<8x128xf32>
    %cst_56 = arith.constant 0.000000e+00 : f32
    %155 = vector.broadcast %cst_56 : f32 to vector<8x128xf32>
    %156 = arith.maximumf %151, %155 : vector<8x128xf32>
    %157 = tpu.concatenate %154, %156 in 1 : vector<8x128xf32>, vector<8x128xf32> -> vector<8x256xf32>
    %158 = arith.truncf %157 : vector<8x256xf32> to vector<8x256xbf16>
    %cst_57 = arith.constant dense<0.000000e+00> : vector<8x128xf32>
    %159 = tpu.matmul %158, %152, %cst_57 {dimension_numbers = #tpu.dot_dimension_numbers<[1], [0], [0], [1], [0, 0, 1, 1], [], []>} : vector<8x256xbf16>, vector<256x128xbf16>, vector<8x128xf32> -> vector<8x128xf32>
    %c0_58 = arith.constant 0 : index
    %c0_59 = arith.constant 0 : index
    %160 = vector.load %arg12[%c0_58, %c0_59] : memref<1x128xf32, #tpu.memory_space<vmem>>, vector<1x128xf32>
    %161 = vector.broadcast %160 : vector<1x128xf32> to vector<8x128xf32>
    %162 = arith.addf %159, %161 : vector<8x128xf32>
    %163 = arith.mulf %162, %162 : vector<8x128xf32>
    %cst_60 = arith.constant dense<0.000000e+00> : vector<8xf32>
    %164 = vector.multi_reduction <add>, %163, %cst_60 [1] : vector<8x128xf32> to vector<8xf32>
    %165 = vector.shape_cast %164 : vector<8xf32> to vector<8x1xf32>
    %166 = math.sqrt %165 : vector<8x1xf32>
    %cst_61 = arith.constant 1.000000e+00 : f32
    %167 = vector.broadcast %cst_61 : f32 to vector<8x1xf32>
    %168 = arith.addf %167, %166 : vector<8x1xf32>
    %169 = vector.broadcast %168 : vector<8x1xf32> to vector<8x128xf32>
    %170 = arith.divf %162, %169 : vector<8x128xf32>
    %c0_62 = arith.constant 0 : index
    %c0_63 = arith.constant 0 : index
    %171 = vector.load %arg13[%c0_62, %c0_63] : memref<128x128xbf16, #tpu.memory_space<vmem>>, vector<128x128xbf16>
    %172 = arith.truncf %170 : vector<8x128xf32> to vector<8x128xbf16>
    %cst_64 = arith.constant dense<0.000000e+00> : vector<8x128xf32>
    %173 = tpu.matmul %172, %171, %cst_64 {dimension_numbers = #tpu.dot_dimension_numbers<[1], [1], [0], [0], [0, 0, 1, 0], [], []>} : vector<8x128xbf16>, vector<128x128xbf16>, vector<8x128xf32> -> vector<8x128xf32>
    %174 = tpu.iota {dimensions = array<i32: 1>} : vector<1x128xi32>
    %c16_i32 = arith.constant 16 : i32
    %175 = vector.broadcast %c16_i32 : i32 to vector<1x128xi32>
    %176 = arith.cmpi slt, %174, %175 : vector<1x128xi32>
    %177 = arith.extui %176 : vector<1x128xi1> to vector<1x128xi32>
    %178 = arith.sitofp %177 : vector<1x128xi32> to vector<1x128xf32>
    %cst_65 = arith.constant dense<0.000000e+00> : vector<8xf32>
    %179 = vector.multi_reduction <add>, %173, %cst_65 [1] : vector<8x128xf32> to vector<8xf32>
    %180 = vector.shape_cast %179 : vector<8xf32> to vector<8x1xf32>
    %cst_66 = arith.constant 6.250000e-02 : f32
    %181 = vector.broadcast %cst_66 : f32 to vector<8x1xf32>
    %182 = arith.mulf %180, %181 : vector<8x1xf32>
    %183 = vector.broadcast %182 : vector<8x1xf32> to vector<8x128xf32>
    %184 = arith.subf %173, %183 : vector<8x128xf32>
    %185 = vector.broadcast %178 : vector<1x128xf32> to vector<8x128xf32>
    %186 = arith.mulf %184, %185 : vector<8x128xf32>
    %187 = arith.mulf %186, %186 : vector<8x128xf32>
    %cst_67 = arith.constant dense<0.000000e+00> : vector<8xf32>
    %188 = vector.multi_reduction <add>, %187, %cst_67 [1] : vector<8x128xf32> to vector<8xf32>
    %189 = vector.shape_cast %188 : vector<8xf32> to vector<8x1xf32>
    %cst_68 = arith.constant 6.250000e-02 : f32
    %190 = vector.broadcast %cst_68 : f32 to vector<8x1xf32>
    %191 = arith.mulf %189, %190 : vector<8x1xf32>
    %cst_69 = arith.constant 9.99999974E-6 : f32
    %192 = vector.broadcast %cst_69 : f32 to vector<8x1xf32>
    %193 = arith.addf %191, %192 : vector<8x1xf32>
    %194 = math.rsqrt %193 : vector<8x1xf32>
    %195 = vector.broadcast %194 : vector<8x1xf32> to vector<8x128xf32>
    %196 = arith.mulf %186, %195 : vector<8x128xf32>
    %c0_70 = arith.constant 0 : index
    %c0_71 = arith.constant 0 : index
    %197 = vector.load %arg14[%c0_70, %c0_71] : memref<1x128xf32, #tpu.memory_space<vmem>>, vector<1x128xf32>
    %198 = vector.broadcast %197 : vector<1x128xf32> to vector<8x128xf32>
    %199 = arith.mulf %196, %198 : vector<8x128xf32>
    %c0_72 = arith.constant 0 : index
    %c0_73 = arith.constant 0 : index
    %200 = vector.load %arg15[%c0_72, %c0_73] : memref<1x128xf32, #tpu.memory_space<vmem>>, vector<1x128xf32>
    %201 = vector.broadcast %200 : vector<1x128xf32> to vector<8x128xf32>
    %202 = arith.addf %199, %201 : vector<8x128xf32>
    %c0_74 = arith.constant 0 : index
    %c0_75 = arith.constant 0 : index
    %203 = vector.load %arg17[%c0_74, %c0_75] : memref<8x128xf32, #tpu.memory_space<vmem>>, vector<8x128xf32>
    tpu.vector_store %arg17[%c0_74, %c0_75], %202 {strides = array<i32>} : memref<8x128xf32, #tpu.memory_space<vmem>>, vector<8x128xf32>,
    %204 = arith.negf %202 : vector<8x128xf32>
    %205 = math.exp %204 : vector<8x128xf32>
    %cst_76 = arith.constant 1.000000e+00 : f32
    %206 = vector.broadcast %cst_76 : f32 to vector<8x128xf32>
    %207 = arith.addf %206, %205 : vector<8x128xf32>
    %208 = arith.divf %206, %207 : vector<8x128xf32>
    %c0_77 = arith.constant 0 : index
    %c0_78 = arith.constant 0 : index
    %209 = vector.load %arg16[%c0_77, %c0_78] : memref<128x128xf32, #tpu.memory_space<vmem>>, vector<128x128xf32>
    %cst_79 = arith.constant dense<0.000000e+00> : vector<8x128xf32>
    %210 = tpu.matmul %208, %209, %cst_79 {dimension_numbers = #tpu.dot_dimension_numbers<[1], [0], [0], [1], [0, 0, 1, 1], [], []>} : vector<8x128xf32>, vector<128x128xf32>, vector<8x128xf32> -> vector<8x128xf32>
    %211 = tpu.iota {dimensions = array<i32: 0>} : vector<8x1xi32>
    %c8_i32 = arith.constant 8 : i32
    %212 = arith.muli %arg0, %c8_i32 : i32
    %c4_i32 = arith.constant 4 : i32
    %213 = arith.subi %c4_i32, %212 : i32
    %c0_i32_80 = arith.constant 0 : i32
    %214 = arith.maxsi %213, %c0_i32_80 : i32
    %c8_i32_81 = arith.constant 8 : i32
    %215 = arith.minsi %214, %c8_i32_81 : i32
    %216 = vector.broadcast %215 : i32 to vector<8x1xi32>
    %217 = arith.cmpi slt, %211, %216 : vector<8x1xi32>
    %218 = arith.extui %217 : vector<8x1xi1> to vector<8x1xi32>
    %219 = arith.sitofp %218 : vector<8x1xi32> to vector<8x1xf32>
    %220 = arith.mulf %208, %210 : vector<8x128xf32>
    %cst_82 = arith.constant dense<0.000000e+00> : vector<8xf32>
    %221 = vector.multi_reduction <add>, %220, %cst_82 [1] : vector<8x128xf32> to vector<8xf32>
    %222 = vector.shape_cast %221 : vector<8xf32> to vector<8x1xf32>
    %cst_83 = arith.constant 5.000000e-04 : f32
    %223 = vector.broadcast %cst_83 : f32 to vector<8x1xf32>
    %224 = arith.mulf %223, %222 : vector<8x1xf32>
    %225 = arith.mulf %224, %219 : vector<8x1xf32>
    %226 = vector.shape_cast %225 : vector<8x1xf32> to vector<8x1xf32>
    %227 = vector.broadcast %226 : vector<8x1xf32> to vector<8x128xf32>
    %c0_84 = arith.constant 0 : index
    %c0_85 = arith.constant 0 : index
    %228 = vector.load %arg18[%c0_84, %c0_85] : memref<8x128xf32, #tpu.memory_space<vmem>>, vector<8x128xf32>
    tpu.vector_store %arg18[%c0_84, %c0_85], %227 {strides = array<i32>} : memref<8x128xf32, #tpu.memory_space<vmem>>, vector<8x128xf32>,
    return
  }
  func.func @transform_0(%arg0: i32) -> (i32, i32) {
    %c0_i32 = arith.constant 0 : i32
    %c0_i32_0 = arith.constant 0 : i32
    return %arg0, %c0_i32 : i32, i32
  }
  func.func @transform_1(%arg0: i32) -> (i32, i32, i32) {
    %c0_i32 = arith.constant 0 : i32
    %c0_i32_0 = arith.constant 0 : i32
    %c0_i32_1 = arith.constant 0 : i32
    return %c0_i32, %arg0, %c0_i32_0 : i32, i32, i32
  }
  func.func @transform_2(%arg0: i32) -> (i32, i32, i32) {
    %c0_i32 = arith.constant 0 : i32
    %c0_i32_0 = arith.constant 0 : i32
    %c0_i32_1 = arith.constant 0 : i32
    return %c0_i32, %arg0, %c0_i32_0 : i32, i32, i32
  }
  func.func @transform_3(%arg0: i32) -> (i32, i32) {
    %c0_i32 = arith.constant 0 : i32
    %c0_i32_0 = arith.constant 0 : i32
    %c0_i32_1 = arith.constant 0 : i32
    return %c0_i32, %c0_i32_0 : i32, i32
  }
  func.func @transform_4(%arg0: i32) -> (i32, i32) {
    %c0_i32 = arith.constant 0 : i32
    %c0_i32_0 = arith.constant 0 : i32
    %c0_i32_1 = arith.constant 0 : i32
    return %c0_i32, %c0_i32_0 : i32, i32
  }
  func.func @transform_5(%arg0: i32) -> (i32, i32) {
    %c0_i32 = arith.constant 0 : i32
    %c0_i32_0 = arith.constant 0 : i32
    %c0_i32_1 = arith.constant 0 : i32
    return %c0_i32, %c0_i32_0 : i32, i32
  }
  func.func @transform_6(%arg0: i32) -> (i32, i32) {
    %c0_i32 = arith.constant 0 : i32
    %c0_i32_0 = arith.constant 0 : i32
    %c0_i32_1 = arith.constant 0 : i32
    return %c0_i32, %c0_i32_0 : i32, i32
  }
  func.func @transform_7(%arg0: i32) -> (i32, i32) {
    %c0_i32 = arith.constant 0 : i32
    %c0_i32_0 = arith.constant 0 : i32
    %c0_i32_1 = arith.constant 0 : i32
    return %c0_i32, %c0_i32_0 : i32, i32
  }
  func.func @transform_8(%arg0: i32) -> (i32, i32) {
    %c0_i32 = arith.constant 0 : i32
    %c0_i32_0 = arith.constant 0 : i32
    %c0_i32_1 = arith.constant 0 : i32
    return %c0_i32, %c0_i32_0 : i32, i32
  }
  func.func @transform_9(%arg0: i32) -> (i32, i32) {
    %c0_i32 = arith.constant 0 : i32
    %c0_i32_0 = arith.constant 0 : i32
    %c0_i32_1 = arith.constant 0 : i32
    return %c0_i32, %c0_i32_0 : i32, i32
  }
  func.func @transform_10(%arg0: i32) -> (i32, i32) {
    %c0_i32 = arith.constant 0 : i32
    %c0_i32_0 = arith.constant 0 : i32
    %c0_i32_1 = arith.constant 0 : i32
    return %c0_i32, %c0_i32_0 : i32, i32
  }
  func.func @transform_11(%arg0: i32) -> (i32, i32) {
    %c0_i32 = arith.constant 0 : i32
    %c0_i32_0 = arith.constant 0 : i32
    %c0_i32_1 = arith.constant 0 : i32
    return %c0_i32, %c0_i32_0 : i32, i32
  }
  func.func @transform_12(%arg0: i32) -> (i32, i32) {
    %c0_i32 = arith.constant 0 : i32
    %c0_i32_0 = arith.constant 0 : i32
    %c0_i32_1 = arith.constant 0 : i32
    return %c0_i32, %c0_i32_0 : i32, i32
  }
  func.func @transform_13(%arg0: i32) -> (i32, i32) {
    %c0_i32 = arith.constant 0 : i32
    %c0_i32_0 = arith.constant 0 : i32
    %c0_i32_1 = arith.constant 0 : i32
    return %c0_i32, %c0_i32_0 : i32, i32
  }
  func.func @transform_14(%arg0: i32) -> (i32, i32) {
    %c0_i32 = arith.constant 0 : i32
    %c0_i32_0 = arith.constant 0 : i32
    %c0_i32_1 = arith.constant 0 : i32
    return %c0_i32, %c0_i32_0 : i32, i32
  }
  func.func @transform_15(%arg0: i32) -> (i32, i32) {
    %c0_i32 = arith.constant 0 : i32
    %c0_i32_0 = arith.constant 0 : i32
    %c0_i32_1 = arith.constant 0 : i32
    return %c0_i32, %c0_i32_0 : i32, i32
  }
  func.func @transform_16(%arg0: i32) -> (i32, i32) {
    %c0_i32 = arith.constant 0 : i32
    %c0_i32_0 = arith.constant 0 : i32
    return %arg0, %c0_i32 : i32, i32
  }
  func.func @transform_17(%arg0: i32) -> (i32, i32) {
    %c0_i32 = arith.constant 0 : i32
    %c0_i32_0 = arith.constant 0 : i32
    return %arg0, %c0_i32 : i32, i32
  }
}

</mosaic_0001>

<llo_original>
// kernel: model_forward.1
$region0: #{model_forward.1}
  #allocation0 [shape = 'u32[]', space=smem, size = 0x4, offset = 0x4, fixed_abs, tag = 'smem constant byte address 0x4 - core index']
  #allocation1 [shape = 'u32[144,128]{1,0:T(1,128)}', space=vmem, size = 0x12000, scoped, tag = 'internal scratch']
  %s0 = inlined_call_operand.vmem [shape: s32[8,1], index: 0, kind: input, shape index: {}]
  %s1 = inlined_call_operand.vmem [shape: bf16[2,8,128], index: 1, kind: input, shape index: {}]
  %s2 = inlined_call_operand.vmem [shape: bf16[2,8,128], index: 2, kind: input, shape index: {}]
  %s3 = inlined_call_operand.vmem [shape: bf16[128,384], index: 3, kind: input, shape index: {}]
  %s4 = inlined_call_operand.vmem [shape: bf16[128,384], index: 4, kind: input, shape index: {}]
  %s5 = inlined_call_operand.vmem [shape: f32[1,384], index: 5, kind: input, shape index: {}]
  %s6 = inlined_call_operand.vmem [shape: f32[1,384], index: 6, kind: input, shape index: {}]
  %s7 = inlined_call_operand.vmem [shape: f32[1,128], index: 7, kind: input, shape index: {}]
  %s8 = inlined_call_operand.vmem [shape: f32[1,128], index: 8, kind: input, shape index: {}]
  %s9 = inlined_call_operand.hbm [shape: f32[256,768], index: 9, kind: input, shape index: {}]
  %s10 = inlined_call_operand.vmem [shape: bf16[256,128], index: 10, kind: input, shape index: {}]
  %s11 = inlined_call_operand.vmem [shape: f32[1,128], index: 11, kind: input, shape index: {}]
  %s12 = inlined_call_operand.vmem [shape: bf16[128,128], index: 12, kind: input, shape index: {}]
  %s13 = inlined_call_operand.vmem [shape: f32[1,128], index: 13, kind: input, shape index: {}]
  %s14 = inlined_call_operand.vmem [shape: f32[1,128], index: 14, kind: input, shape index: {}]
  %s15 = inlined_call_operand.vmem [shape: f32[128,128], index: 15, kind: input, shape index: {}]
  %s16 = inlined_call_operand.vmem [shape: f32[8,128], index: 16, kind: output, shape index: {0}]
  %s17 = inlined_call_operand.vmem [shape: f32[8,128], index: 17, kind: output, shape index: {1}]
  %18 = xla_tuple %s16, %s17
  %s19 = sld [smem:[#allocation0]]
  $region86: #{model_forward.1} parent=0
    _
  %s21 = ssub.s32 1, %s19
  %s22 = scalar_select 0, %s21, %s19
  $region1: #{model_forward.1} parent=0
    #allocation2 [shape = 'u8[786432]{0}', space=vmem, size = 0xc0000, scoped, tag = 'input window, operand 9, single buffered']
    #allocation3 [shape = 's32[1]{0}', space=sflag, size = 0x4, scoped, tag = 'scoped memory for model_forward.1']
    %23 = vsyncpa [#allocation3], 0
    // Predicated region
    $region2: #{model_forward.1} parent=1 // pred_check
      _
    $region3: #{model_forward.1} parent=1 // pred_check_branch
      %25 = sbr.rel (0) target = $region5
    $region4: #{model_forward.1} parent=1 // pred_region
      _
    $region5: #{model_forward.1} parent=1 // pred_fallthru
      _
    // Predicated region
    $region6: #{model_forward.1} parent=1 // pred_check
      _
    $region7: #{model_forward.1} parent=1 // pred_check_branch
      %27 = sbr.rel (0) target = $region9
    $region8: #{model_forward.1} parent=1 // pred_region
      _
    $region9: #{model_forward.1} parent=1 // pred_fallthru
      _
    // Predicated region
    $region10: #{model_forward.1} parent=1 // pred_check
      _
    $region11: #{model_forward.1} parent=1 // pred_check_branch
      %29 = sbr.rel (0) target = $region13
    $region12: #{model_forward.1} parent=1 // pred_region
      _
    $region13: #{model_forward.1} parent=1 // pred_fallthru
      _
    // Predicated region
    $region14: #{model_forward.1} parent=1 // pred_check
      _
    $region15: #{model_forward.1} parent=1 // pred_check_branch
      %31 = sbr.rel (0) target = $region17
    $region16: #{model_forward.1} parent=1 // pred_region
      _
    $region17: #{model_forward.1} parent=1 // pred_fallthru
      _
    // Predicated region
    $region18: #{model_forward.1} parent=1 // pred_check
      _
    $region19: #{model_forward.1} parent=1 // pred_check_branch
      %33 = sbr.rel (0) target = $region21
    $region20: #{model_forward.1} parent=1 // pred_region
      _
    $region21: #{model_forward.1} parent=1 // pred_fallthru
      _
    // Predicated region
    $region22: #{model_forward.1} parent=1 // pred_check
      _
    $region23: #{model_forward.1} parent=1 // pred_check_branch
      %35 = sbr.rel (0) target = $region25
    $region24: #{model_forward.1} parent=1 // pred_region
      _
    $region25: #{model_forward.1} parent=1 // pred_fallthru
      _
    // Predicated region
    $region26: #{model_forward.1} parent=1 // pred_check
      _
    $region27: #{model_forward.1} parent=1 // pred_check_branch
      %37 = sbr.rel (0) target = $region29
    $region28: #{model_forward.1} parent=1 // pred_region
      _
    $region29: #{model_forward.1} parent=1 // pred_fallthru
      _
    // Predicated region
    $region30: #{model_forward.1} parent=1 // pred_check
      _
    $region31: #{model_forward.1} parent=1 // pred_check_branch
      %39 = sbr.rel (0) target = $region33
    $region32: #{model_forward.1} parent=1 // pred_region
      _
    $region33: #{model_forward.1} parent=1 // pred_fallthru
      _
    // Predicated region
    $region34: #{model_forward.1} parent=1 // pred_check
      _
    $region35: #{model_forward.1} parent=1 // pred_check_branch
      %41 = sbr.rel (0) target = $region37
    $region36: #{model_forward.1} parent=1 // pred_region
      _
    $region37: #{model_forward.1} parent=1 // pred_fallthru
      _
    // Predicated region
    $region38: #{model_forward.1} parent=1 // pred_check
      _
    $region39: #{model_forward.1} parent=1 // pred_check_branch
      %43 = sbr.rel (0) target = $region41
    $region40: #{model_forward.1} parent=1 // pred_region
      %s45 = ssub.s32 24576, 24576
      %46 = vsyncadd [#allocation3], %s45
      %s47 = sshll.u32 [#allocation2], 4
      %s48 = int_to_ptr.vmem [resolvable:$true] %s47
      %53 = dma.hbm_to_vmem [thread:$0]  %s9, 24576, %s48, [#allocation3], 768, 768, 48
    $region41: #{model_forward.1} parent=1 // pred_fallthru
      _
    // Predicated region
    $region42: #{model_forward.1} parent=1 // pred_check
      _
    $region43: #{model_forward.1} parent=1 // pred_check_branch
      %55 = sbr.rel (0) target = $region45
    $region44: #{model_forward.1} parent=1 // pred_region
      _
    $region45: #{model_forward.1} parent=1 // pred_fallthru
      _
    // Predicated region
    $region46: #{model_forward.1} parent=1 // pred_check
      _
    $region47: #{model_forward.1} parent=1 // pred_check_branch
      %57 = sbr.rel (0) target = $region49
    $region48: #{model_forward.1} parent=1 // pred_region
      _
    $region49: #{model_forward.1} parent=1 // pred_fallthru
      _
    // Predicated region
    $region50: #{model_forward.1} parent=1 // pred_check
      _
    $region51: #{model_forward.1} parent=1 // pred_check_branch
      %59 = sbr.rel (0) target = $region53
    $region52: #{model_forward.1} parent=1 // pred_region
      _
    $region53: #{model_forward.1} parent=1 // pred_fallthru
      _
    // Predicated region
    $region54: #{model_forward.1} parent=1 // pred_check
      _
    $region55: #{model_forward.1} parent=1 // pred_check_branch
      %61 = sbr.rel (0) target = $region57
    $region56: #{model_forward.1} parent=1 // pred_region
      _
    $region57: #{model_forward.1} parent=1 // pred_fallthru
      _
    // Predicated region
    $region58: #{model_forward.1} parent=1 // pred_check
      _
    $region59: #{model_forward.1} parent=1 // pred_check_branch
      %63 = sbr.rel (0) target = $region61
    $region60: #{model_forward.1} parent=1 // pred_region
      _
    $region61: #{model_forward.1} parent=1 // pred_fallthru
      _
    // Predicated region
    $region62: #{model_forward.1} parent=1 // pred_check
      _
    $region63: #{model_forward.1} parent=1 // pred_check_branch
      %65 = sbr.rel (0) target = $region65
    $region64: #{model_forward.1} parent=1 // pred_region
      _
    $region65: #{model_forward.1} parent=1 // pred_fallthru
      _
    // Predicated region
    $region66: #{model_forward.1} parent=1 // pred_check
      _
    $region67: #{model_forward.1} parent=1 // pred_check_branch
      %67 = sbr.rel (0) target = $region69
    $region68: #{model_forward.1} parent=1 // pred_region
      %68 = dma.done [#allocation3], 24576
    $region69: #{model_forward.1} parent=1 // pred_fallthru
      _
    %v70 = vld [vmem:[%s1] sm:$0xf]
    %v71 = vld [vmem:[%s3] sm:$0xff]
    %v72 = vld [vmem:[%s3 + $0x8] sm:$0xf]
    %v73 = vld [vmem:[%s3 + $0xc] sm:$0xff]
    %v74 = vld [vmem:[%s3 + $0x14] sm:$0xf]
    %v75 = vld [vmem:[%s3 + $0x18] sm:$0xff]
    %v76 = vld [vmem:[%s3 + $0x20] sm:$0xf]
    %v77 = vld [vmem:[%s3 + $0x24] sm:$0xff]
    %v78 = vld [vmem:[%s3 + $0x2c] sm:$0xf]
    %v79 = vld [vmem:[%s3 + $0x30] sm:$0xff]
    %v80 = vld [vmem:[%s3 + $0x38] sm:$0xf]
    %v81 = vld [vmem:[%s3 + $0x3c] sm:$0xff]
    %v82 = vld [vmem:[%s3 + $0x44] sm:$0xf]
    %v83 = vld [vmem:[%s3 + $0x48] sm:$0xff]
    %v84 = vld [vmem:[%s3 + $0x50] sm:$0xf]
    %v85 = vld [vmem:[%s3 + $0x54] sm:$0xff]
    %v86 = vld [vmem:[%s3 + $0x5c] sm:$0xf]
    %v87 = vld [vmem:[%s3 + $0x60] sm:$0xff]
    %v88 = vld [vmem:[%s3 + $0x68] sm:$0xf]
    %v89 = vld [vmem:[%s3 + $0x6c] sm:$0xff]
    %v90 = vld [vmem:[%s3 + $0x74] sm:$0xf]
    %v91 = vld [vmem:[%s3 + $0x78] sm:$0xff]
    %v92 = vld [vmem:[%s3 + $0x80] sm:$0xf]
    %v93 = vld [vmem:[%s3 + $0x84] sm:$0xff]
    %v94 = vld [vmem:[%s3 + $0x8c] sm:$0xf]
    %v95 = vld [vmem:[%s3 + $0x90] sm:$0xff]
    %v96 = vld [vmem:[%s3 + $0x98] sm:$0xf]
    %v97 = vld [vmem:[%s3 + $0x9c] sm:$0xff]
    %v98 = vld [vmem:[%s3 + $0xa4] sm:$0xf]
    %v99 = vld [vmem:[%s3 + $0xa8] sm:$0xff]
    %v100 = vld [vmem:[%s3 + $0xb0] sm:$0xf]
    %v101 = vld [vmem:[%s3 + $0xb4] sm:$0xff]
    %v102 = vld [vmem:[%s3 + $0xbc] sm:$0xf]
    %v103 = vld [vmem:[%s5] sm:$0x7]
    %v105 = vlaneseq
    %v106 = vshrl.u32 %v105, 7
    %v107 = vsub.s32 0, %v106
    %v108 = vrot.slane %v103, %v107
    %v109 = vlaneseq
    %v110 = vshrl.u32 %v109, 7
    %v111 = vsub.s32 1, %v110
    %v112 = vrot.slane %v103, %v111
    %v113 = vlaneseq
    %v114 = vshrl.u32 %v113, 7
    %v115 = vsub.s32 2, %v114
    %v116 = vrot.slane %v103, %v115
    %v152 = vunpack.c.l.b16 %v71
    %v153 = vunpack.c.h.b16 %v71
    %v154 = vunpack.c.l.b16 %v72
    %v155 = vunpack.c.l.b16 %v73
    %v156 = vunpack.c.h.b16 %v73
    %v157 = vunpack.c.l.b16 %v74
    %v158 = vunpack.c.l.b16 %v75
    %v159 = vunpack.c.h.b16 %v75
    %v160 = vunpack.c.l.b16 %v76
    %v161 = vunpack.c.l.b16 %v77
    %v162 = vunpack.c.h.b16 %v77
    %v163 = vunpack.c.l.b16 %v78
    %v164 = vunpack.c.l.b16 %v79
    %v165 = vunpack.c.h.b16 %v79
    %v166 = vunpack.c.l.b16 %v80
    %v167 = vunpack.c.l.b16 %v81
    %v168 = vunpack.c.h.b16 %v81
    %v169 = vunpack.c.l.b16 %v82
    %v170 = vunpack.c.l.b16 %v83
    %v171 = vunpack.c.h.b16 %v83
    %v172 = vunpack.c.l.b16 %v84
    %v173 = vunpack.c.l.b16 %v85
    %v174 = vunpack.c.h.b16 %v85
    %v175 = vunpack.c.l.b16 %v86
    %v176 = vunpack.c.l.b16 %v87
    %v177 = vunpack.c.h.b16 %v87
    %v178 = vunpack.c.l.b16 %v88
    %v179 = vunpack.c.l.b16 %v89
    %v180 = vunpack.c.h.b16 %v89
    %v181 = vunpack.c.l.b16 %v90
    %v182 = vunpack.c.l.b16 %v91
    %v183 = vunpack.c.h.b16 %v91
    %v184 = vunpack.c.l.b16 %v92
    %v185 = vunpack.c.l.b16 %v93
    %v186 = vunpack.c.h.b16 %v93
    %v187 = vunpack.c.l.b16 %v94
    %v188 = vunpack.c.l.b16 %v95
    %v189 = vunpack.c.h.b16 %v95
    %v190 = vunpack.c.l.b16 %v96
    %v191 = vunpack.c.l.b16 %v97
    %v192 = vunpack.c.h.b16 %v97
    %v193 = vunpack.c.l.b16 %v98
    %v194 = vunpack.c.l.b16 %v99
    %v195 = vunpack.c.h.b16 %v99
    %v196 = vunpack.c.l.b16 %v100
    %v197 = vunpack.c.l.b16 %v101
    %v198 = vunpack.c.h.b16 %v101
    %v199 = vunpack.c.l.b16 %v102
    %v200 = vpack.c.b16 %v155, %v152
    %v201 = vpack.c.b16 %v156, %v153
    %v202 = vpack.c.b16 %v157, %v154
    %v203 = vpack.c.b16 %v161, %v158
    %v204 = vpack.c.b16 %v162, %v159
    %v205 = vpack.c.b16 %v163, %v160
    %v206 = vpack.c.b16 %v167, %v164
    %v207 = vpack.c.b16 %v168, %v165
    %v208 = vpack.c.b16 %v169, %v166
    %v209 = vpack.c.b16 %v173, %v170
    %v210 = vpack.c.b16 %v174, %v171
    %v211 = vpack.c.b16 %v175, %v172
    %v212 = vpack.c.b16 %v179, %v176
    %v213 = vpack.c.b16 %v180, %v177
    %v214 = vpack.c.b16 %v181, %v178
    %v215 = vpack.c.b16 %v185, %v182
    %v216 = vpack.c.b16 %v186, %v183
    %v217 = vpack.c.b16 %v187, %v184
    %v218 = vpack.c.b16 %v191, %v188
    %v219 = vpack.c.b16 %v192, %v189
    %v220 = vpack.c.b16 %v193, %v190
    %v221 = vpack.c.b16 %v197, %v194
    %v222 = vpack.c.b16 %v198, %v195
    %v223 = vpack.c.b16 %v199, %v196
    %248 = vmatprep.subr.bf16.mxu0 %v201
    %249 = vmatpush1.bf16.msra.mxu0 %v200
    %250 = vmatprep.subr.bf16.mxu0 %v204
    %251 = vmatpush1.bf16.msra.mxu0 %v203
    %252 = vmatprep.subr.bf16.mxu0 %v207
    %253 = vmatpush1.bf16.msra.mxu0 %v206
    %254 = vmatprep.subr.bf16.mxu0 %v210
    %255 = vmatpush1.bf16.msra.mxu0 %v209
    %256 = vmatprep.subr.bf16.mxu0 %v213
    %257 = vmatpush1.bf16.msra.mxu0 %v212
    %258 = vmatprep.subr.bf16.mxu0 %v216
    %259 = vmatpush1.bf16.msra.mxu0 %v215
    %260 = vmatprep.subr.bf16.mxu0 %v219
    %261 = vmatpush1.bf16.msra.mxu0 %v218
    %262 = vmatprep.subr.bf16.mxu0 %v222
    %263 = vmatpush1.bf16.msra.mxu0 %v221
    %264 = vmatprep.subr.bf16.mxu0 0
    %265 = vmatpush1.bf16.msra.mxu0 0
    %266 = vmatprep.subr.bf16.mxu0 0
    %267 = vmatpush1.bf16.msra.mxu0 0
    %268 = vmatprep.subr.bf16.mxu0 0
    %269 = vmatpush1.bf16.msra.mxu0 0
    %270 = vmatprep.subr.bf16.mxu0 0
    %271 = vmatpush1.bf16.msra.mxu0 0
    %272 = vmatprep.subr.bf16.mxu0 0
    %273 = vmatpush1.bf16.msra.mxu0 0
    %274 = vmatprep.subr.bf16.mxu0 0
    %275 = vmatpush1.bf16.msra.mxu0 0
    %276 = vmatprep.subr.bf16.mxu0 0
    %277 = vmatpush1.bf16.msra.mxu0 0
    %278 = vmatprep.subr.bf16.mxu0 0
    %279 = vmatpush1.bf16.msra.mxu0 0
    %280 = vmatprep.mubr.bf16.mxu0 0
    %281 = vmatmul.mubr.bf16.gmra.mrb[0].mxu0 %v70
    %v282 = vpop.f32.mrb[0].mxu0
    %v283 = vadd.f32 %v108, %v282
    %v284 = vpop.f32.mrb[0].mxu0
    %v285 = vadd.f32 %v112, %v284
    %v286 = vpop.f32.mrb[0].mxu0
    %v287 = vpop.f32.mrb[0].mxu0
    %288 = vdwg.mxu0
    %289 = vmatprep.subr.bf16.mxu0 0
    %290 = vmatpush1.bf16.msra.mxu0 %v202
    %291 = vmatprep.subr.bf16.mxu0 0
    %292 = vmatpush1.bf16.msra.mxu0 %v205
    %293 = vmatprep.subr.bf16.mxu0 0
    %294 = vmatpush1.bf16.msra.mxu0 %v208
    %295 = vmatprep.subr.bf16.mxu0 0
    %296 = vmatpush1.bf16.msra.mxu0 %v211
    %297 = vmatprep.subr.bf16.mxu0 0
    %298 = vmatpush1.bf16.msra.mxu0 %v214
    %299 = vmatprep.subr.bf16.mxu0 0
    %300 = vmatpush1.bf16.msra.mxu0 %v217
    %301 = vmatprep.subr.bf16.mxu0 0
    %302 = vmatpush1.bf16.msra.mxu0 %v220
    %303 = vmatprep.subr.bf16.mxu0 0
    %304 = vmatpush1.bf16.msra.mxu0 %v223
    %305 = vmatprep.subr.bf16.mxu0 0
    %306 = vmatpush1.bf16.msra.mxu0 0
    %307 = vmatprep.subr.bf16.mxu0 0
    %308 = vmatpush1.bf16.msra.mxu0 0
    %309 = vmatprep.subr.bf16.mxu0 0
    %310 = vmatpush1.bf16.msra.mxu0 0
    %311 = vmatprep.subr.bf16.mxu0 0
    %312 = vmatpush1.bf16.msra.mxu0 0
    %313 = vmatprep.subr.bf16.mxu0 0
    %314 = vmatpush1.bf16.msra.mxu0 0
    %315 = vmatprep.subr.bf16.mxu0 0
    %316 = vmatpush1.bf16.msra.mxu0 0
    %317 = vmatprep.subr.bf16.mxu0 0
    %318 = vmatpush1.bf16.msra.mxu0 0
    %319 = vmatprep.subr.bf16.mxu0 0
    %320 = vmatpush1.bf16.msra.mxu0 0
    %321 = vmatprep.mubr.bf16.mxu0 0
    %322 = vmatmul.mubr.bf16.gmra.mrb[0].mxu0 %v70
    %v323 = vpop.f32.mrb[0].mxu0
    %v324 = vadd.f32 %v116, %v323
    %v325 = vpop.f32.mrb[0].mxu0
    %v326 = vpop.f32.mrb[0].mxu0
    %v327 = vpop.f32.mrb[0].mxu0
    %328 = vdwg.mxu0
    %v329 = vld [vmem:[%s2] sm:$0xf]
    %v330 = vld [vmem:[%s4] sm:$0xff]
    %v331 = vld [vmem:[%s4 + $0x8] sm:$0xf]
    %v332 = vld [vmem:[%s4 + $0xc] sm:$0xff]
    %v333 = vld [vmem:[%s4 + $0x14] sm:$0xf]
    %v334 = vld [vmem:[%s4 + $0x18] sm:$0xff]
    %v335 = vld [vmem:[%s4 + $0x20] sm:$0xf]
    %v336 = vld [vmem:[%s4 + $0x24] sm:$0xff]
    %v337 = vld [vmem:[%s4 + $0x2c] sm:$0xf]
    %v338 = vld [vmem:[%s4 + $0x30] sm:$0xff]
    %v339 = vld [vmem:[%s4 + $0x38] sm:$0xf]
    %v340 = vld [vmem:[%s4 + $0x3c] sm:$0xff]
    %v341 = vld [vmem:[%s4 + $0x44] sm:$0xf]
    %v342 = vld [vmem:[%s4 + $0x48] sm:$0xff]
    %v343 = vld [vmem:[%s4 + $0x50] sm:$0xf]
    %v344 = vld [vmem:[%s4 + $0x54] sm:$0xff]
    %v345 = vld [vmem:[%s4 + $0x5c] sm:$0xf]
    %v346 = vld [vmem:[%s4 + $0x60] sm:$0xff]
    %v347 = vld [vmem:[%s4 + $0x68] sm:$0xf]
    %v348 = vld [vmem:[%s4 + $0x6c] sm:$0xff]
    %v349 = vld [vmem:[%s4 + $0x74] sm:$0xf]
    %v350 = vld [vmem:[%s4 + $0x78] sm:$0xff]
    %v351 = vld [vmem:[%s4 + $0x80] sm:$0xf]
    %v352 = vld [vmem:[%s4 + $0x84] sm:$0xff]
    %v353 = vld [vmem:[%s4 + $0x8c] sm:$0xf]
    %v354 = vld [vmem:[%s4 + $0x90] sm:$0xff]
    %v355 = vld [vmem:[%s4 + $0x98] sm:$0xf]
    %v356 = vld [vmem:[%s4 + $0x9c] sm:$0xff]
    %v357 = vld [vmem:[%s4 + $0xa4] sm:$0xf]
    %v358 = vld [vmem:[%s4 + $0xa8] sm:$0xff]
    %v359 = vld [vmem:[%s4 + $0xb0] sm:$0xf]
    %v360 = vld [vmem:[%s4 + $0xb4] sm:$0xff]
    %v361 = vld [vmem:[%s4 + $0xbc] sm:$0xf]
    %v362 = vld [vmem:[%s6] sm:$0x7]
    %v364 = vlaneseq
    %v365 = vshrl.u32 %v364, 7
    %v366 = vsub.s32 0, %v365
    %v367 = vrot.slane %v362, %v366
    %v368 = vlaneseq
    %v369 = vshrl.u32 %v368, 7
    %v370 = vsub.s32 1, %v369
    %v371 = vrot.slane %v362, %v370
    %v372 = vlaneseq
    %v373 = vshrl.u32 %v372, 7
    %v374 = vsub.s32 2, %v373
    %v375 = vrot.slane %v362, %v374
    %v411 = vunpack.c.l.b16 %v330
    %v412 = vunpack.c.h.b16 %v330
    %v413 = vunpack.c.l.b16 %v331
    %v414 = vunpack.c.l.b16 %v332
    %v415 = vunpack.c.h.b16 %v332
    %v416 = vunpack.c.l.b16 %v333
    %v417 = vunpack.c.l.b16 %v334
    %v418 = vunpack.c.h.b16 %v334
    %v419 = vunpack.c.l.b16 %v335
    %v420 = vunpack.c.l.b16 %v336
    %v421 = vunpack.c.h.b16 %v336
    %v422 = vunpack.c.l.b16 %v337
    %v423 = vunpack.c.l.b16 %v338
    %v424 = vunpack.c.h.b16 %v338
    %v425 = vunpack.c.l.b16 %v339
    %v426 = vunpack.c.l.b16 %v340
    %v427 = vunpack.c.h.b16 %v340
    %v428 = vunpack.c.l.b16 %v341
    %v429 = vunpack.c.l.b16 %v342
    %v430 = vunpack.c.h.b16 %v342
    %v431 = vunpack.c.l.b16 %v343
    %v432 = vunpack.c.l.b16 %v344
    %v433 = vunpack.c.h.b16 %v344
    %v434 = vunpack.c.l.b16 %v345
    %v435 = vunpack.c.l.b16 %v346
    %v436 = vunpack.c.h.b16 %v346
    %v437 = vunpack.c.l.b16 %v347
    %v438 = vunpack.c.l.b16 %v348
    %v439 = vunpack.c.h.b16 %v348
    %v440 = vunpack.c.l.b16 %v349
    %v441 = vunpack.c.l.b16 %v350
    %v442 = vunpack.c.h.b16 %v350
    %v443 = vunpack.c.l.b16 %v351
    %v444 = vunpack.c.l.b16 %v352
    %v445 = vunpack.c.h.b16 %v352
    %v446 = vunpack.c.l.b16 %v353
    %v447 = vunpack.c.l.b16 %v354
    %v448 = vunpack.c.h.b16 %v354
    %v449 = vunpack.c.l.b16 %v355
    %v450 = vunpack.c.l.b16 %v356
    %v451 = vunpack.c.h.b16 %v356
    %v452 = vunpack.c.l.b16 %v357
    %v453 = vunpack.c.l.b16 %v358
    %v454 = vunpack.c.h.b16 %v358
    %v455 = vunpack.c.l.b16 %v359
    %v456 = vunpack.c.l.b16 %v360
    %v457 = vunpack.c.h.b16 %v360
    %v458 = vunpack.c.l.b16 %v361
    %v459 = vpack.c.b16 %v414, %v411
    %v460 = vpack.c.b16 %v415, %v412
    %v461 = vpack.c.b16 %v416, %v413
    %v462 = vpack.c.b16 %v420, %v417
    %v463 = vpack.c.b16 %v421, %v418
    %v464 = vpack.c.b16 %v422, %v419
    %v465 = vpack.c.b16 %v426, %v423
    %v466 = vpack.c.b16 %v427, %v424
    %v467 = vpack.c.b16 %v428, %v425
    %v468 = vpack.c.b16 %v432, %v429
    %v469 = vpack.c.b16 %v433, %v430
    %v470 = vpack.c.b16 %v434, %v431
    %v471 = vpack.c.b16 %v438, %v435
    %v472 = vpack.c.b16 %v439, %v436
    %v473 = vpack.c.b16 %v440, %v437
    %v474 = vpack.c.b16 %v444, %v441
    %v475 = vpack.c.b16 %v445, %v442
    %v476 = vpack.c.b16 %v446, %v443
    %v477 = vpack.c.b16 %v450, %v447
    %v478 = vpack.c.b16 %v451, %v448
    %v479 = vpack.c.b16 %v452, %v449
    %v480 = vpack.c.b16 %v456, %v453
    %v481 = vpack.c.b16 %v457, %v454
    %v482 = vpack.c.b16 %v458, %v455
    %507 = vmatprep.subr.bf16.mxu0 %v460
    %508 = vmatpush1.bf16.msra.mxu0 %v459
    %509 = vmatprep.subr.bf16.mxu0 %v463
    %510 = vmatpush1.bf16.msra.mxu0 %v462
    %511 = vmatprep.subr.bf16.mxu0 %v466
    %512 = vmatpush1.bf16.msra.mxu0 %v465
    %513 = vmatprep.subr.bf16.mxu0 %v469
    %514 = vmatpush1.bf16.msra.mxu0 %v468
    %515 = vmatprep.subr.bf16.mxu0 %v472
    %516 = vmatpush1.bf16.msra.mxu0 %v471
    %517 = vmatprep.subr.bf16.mxu0 %v475
    %518 = vmatpush1.bf16.msra.mxu0 %v474
    %519 = vmatprep.subr.bf16.mxu0 %v478
    %520 = vmatpush1.bf16.msra.mxu0 %v477
    %521 = vmatprep.subr.bf16.mxu0 %v481
    %522 = vmatpush1.bf16.msra.mxu0 %v480
    %523 = vmatprep.subr.bf16.mxu0 0
    %524 = vmatpush1.bf16.msra.mxu0 0
    %525 = vmatprep.subr.bf16.mxu0 0
    %526 = vmatpush1.bf16.msra.mxu0 0
    %527 = vmatprep.subr.bf16.mxu0 0
    %528 = vmatpush1.bf16.msra.mxu0 0
    %529 = vmatprep.subr.bf16.mxu0 0
    %530 = vmatpush1.bf16.msra.mxu0 0
    %531 = vmatprep.subr.bf16.mxu0 0
    %532 = vmatpush1.bf16.msra.mxu0 0
    %533 = vmatprep.subr.bf16.mxu0 0
    %534 = vmatpush1.bf16.msra.mxu0 0
    %535 = vmatprep.subr.bf16.mxu0 0
    %536 = vmatpush1.bf16.msra.mxu0 0
    %537 = vmatprep.subr.bf16.mxu0 0
    %538 = vmatpush1.bf16.msra.mxu0 0
    %539 = vmatprep.mubr.bf16.mxu0 0
    %540 = vmatmul.mubr.bf16.gmra.mrb[0].mxu0 %v329
    %v541 = vpop.f32.mrb[0].mxu0
    %v542 = vadd.f32 %v367, %v541
    %v543 = vpop.f32.mrb[0].mxu0
    %v544 = vadd.f32 %v371, %v543
    %v545 = vpop.f32.mrb[0].mxu0
    %v546 = vpop.f32.mrb[0].mxu0
    %547 = vdwg.mxu0
    %548 = vmatprep.subr.bf16.mxu0 0
    %549 = vmatpush1.bf16.msra.mxu0 %v461
    %550 = vmatprep.subr.bf16.mxu0 0
    %551 = vmatpush1.bf16.msra.mxu0 %v464
    %552 = vmatprep.subr.bf16.mxu0 0
    %553 = vmatpush1.bf16.msra.mxu0 %v467
    %554 = vmatprep.subr.bf16.mxu0 0
    %555 = vmatpush1.bf16.msra.mxu0 %v470
    %556 = vmatprep.subr.bf16.mxu0 0
    %557 = vmatpush1.bf16.msra.mxu0 %v473
    %558 = vmatprep.subr.bf16.mxu0 0
    %559 = vmatpush1.bf16.msra.mxu0 %v476
    %560 = vmatprep.subr.bf16.mxu0 0
    %561 = vmatpush1.bf16.msra.mxu0 %v479
    %562 = vmatprep.subr.bf16.mxu0 0
    %563 = vmatpush1.bf16.msra.mxu0 %v482
    %564 = vmatprep.subr.bf16.mxu0 0
    %565 = vmatpush1.bf16.msra.mxu0 0
    %566 = vmatprep.subr.bf16.mxu0 0
    %567 = vmatpush1.bf16.msra.mxu0 0
    %568 = vmatprep.subr.bf16.mxu0 0
    %569 = vmatpush1.bf16.msra.mxu0 0
    %570 = vmatprep.subr.bf16.mxu0 0
    %571 = vmatpush1.bf16.msra.mxu0 0
    %572 = vmatprep.subr.bf16.mxu0 0
    %573 = vmatpush1.bf16.msra.mxu0 0
    %574 = vmatprep.subr.bf16.mxu0 0
    %575 = vmatpush1.bf16.msra.mxu0 0
    %576 = vmatprep.subr.bf16.mxu0 0
    %577 = vmatpush1.bf16.msra.mxu0 0
    %578 = vmatprep.subr.bf16.mxu0 0
    %579 = vmatpush1.bf16.msra.mxu0 0
    %580 = vmatprep.mubr.bf16.mxu0 0
    %581 = vmatmul.mubr.bf16.gmra.mrb[0].mxu0 %v329
    %v582 = vpop.f32.mrb[0].mxu0
    %v583 = vadd.f32 %v375, %v582
    %v584 = vpop.f32.mrb[0].mxu0
    %v585 = vpop.f32.mrb[0].mxu0
    %v586 = vpop.f32.mrb[0].mxu0
    %587 = vdwg.mxu0
    %s588 = scalar_lea.vmem %s1, 4
    %v589 = vld [vmem:[%s588] sm:$0xf]
    %590 = vmatprep.subr.bf16.mxu0 %v201
    %591 = vmatpush1.bf16.msra.mxu0 %v200
    %592 = vmatprep.subr.bf16.mxu0 %v204
    %593 = vmatpush1.bf16.msra.mxu0 %v203
    %594 = vmatprep.subr.bf16.mxu0 %v207
    %595 = vmatpush1.bf16.msra.mxu0 %v206
    %596 = vmatprep.subr.bf16.mxu0 %v210
    %597 = vmatpush1.bf16.msra.mxu0 %v209
    %598 = vmatprep.subr.bf16.mxu0 %v213
    %599 = vmatpush1.bf16.msra.mxu0 %v212
    %600 = vmatprep.subr.bf16.mxu0 %v216
    %601 = vmatpush1.bf16.msra.mxu0 %v215
    %602 = vmatprep.subr.bf16.mxu0 %v219
    %603 = vmatpush1.bf16.msra.mxu0 %v218
    %604 = vmatprep.subr.bf16.mxu0 %v222
    %605 = vmatpush1.bf16.msra.mxu0 %v221
    %606 = vmatprep.subr.bf16.mxu0 0
    %607 = vmatpush1.bf16.msra.mxu0 0
    %608 = vmatprep.subr.bf16.mxu0 0
    %609 = vmatpush1.bf16.msra.mxu0 0
    %610 = vmatprep.subr.bf16.mxu0 0
    %611 = vmatpush1.bf16.msra.mxu0 0
    %612 = vmatprep.subr.bf16.mxu0 0
    %613 = vmatpush1.bf16.msra.mxu0 0
    %614 = vmatprep.subr.bf16.mxu0 0
    %615 = vmatpush1.bf16.msra.mxu0 0
    %616 = vmatprep.subr.bf16.mxu0 0
    %617 = vmatpush1.bf16.msra.mxu0 0
    %618 = vmatprep.subr.bf16.mxu0 0
    %619 = vmatpush1.bf16.msra.mxu0 0
    %620 = vmatprep.subr.bf16.mxu0 0
    %621 = vmatpush1.bf16.msra.mxu0 0
    %622 = vmatprep.mubr.bf16.mxu0 0
    %623 = vmatmul.mubr.bf16.gmra.mrb[0].mxu0 %v589
    %v624 = vpop.f32.mrb[0].mxu0
    %v625 = vadd.f32 %v108, %v624
    %v626 = vpop.f32.mrb[0].mxu0
    %v627 = vadd.f32 %v112, %v626
    %v628 = vpop.f32.mrb[0].mxu0
    %v629 = vpop.f32.mrb[0].mxu0
    %630 = vdwg.mxu0
    %631 = vmatprep.subr.bf16.mxu0 0
    %632 = vmatpush1.bf16.msra.mxu0 %v202
    %633 = vmatprep.subr.bf16.mxu0 0
    %634 = vmatpush1.bf16.msra.mxu0 %v205
    %635 = vmatprep.subr.bf16.mxu0 0
    %636 = vmatpush1.bf16.msra.mxu0 %v208
    %637 = vmatprep.subr.bf16.mxu0 0
    %638 = vmatpush1.bf16.msra.mxu0 %v211
    %639 = vmatprep.subr.bf16.mxu0 0
    %640 = vmatpush1.bf16.msra.mxu0 %v214
    %641 = vmatprep.subr.bf16.mxu0 0
    %642 = vmatpush1.bf16.msra.mxu0 %v217
    %643 = vmatprep.subr.bf16.mxu0 0
    %644 = vmatpush1.bf16.msra.mxu0 %v220
    %645 = vmatprep.subr.bf16.mxu0 0
    %646 = vmatpush1.bf16.msra.mxu0 %v223
    %647 = vmatprep.subr.bf16.mxu0 0
    %648 = vmatpush1.bf16.msra.mxu0 0
    %649 = vmatprep.subr.bf16.mxu0 0
    %650 = vmatpush1.bf16.msra.mxu0 0
    %651 = vmatprep.subr.bf16.mxu0 0
    %652 = vmatpush1.bf16.msra.mxu0 0
    %653 = vmatprep.subr.bf16.mxu0 0
    %654 = vmatpush1.bf16.msra.mxu0 0
    %655 = vmatprep.subr.bf16.mxu0 0
    %656 = vmatpush1.bf16.msra.mxu0 0
    %657 = vmatprep.subr.bf16.mxu0 0
    %658 = vmatpush1.bf16.msra.mxu0 0
    %659 = vmatprep.subr.bf16.mxu0 0
    %660 = vmatpush1.bf16.msra.mxu0 0
    %661 = vmatprep.subr.bf16.mxu0 0
    %662 = vmatpush1.bf16.msra.mxu0 0
    %663 = vmatprep.mubr.bf16.mxu0 0
    %664 = vmatmul.mubr.bf16.gmra.mrb[0].mxu0 %v589
    %v665 = vpop.f32.mrb[0].mxu0
    %v666 = vadd.f32 %v116, %v665
    %v667 = vpop.f32.mrb[0].mxu0
    %v668 = vpop.f32.mrb[0].mxu0
    %v669 = vpop.f32.mrb[0].mxu0
    %670 = vdwg.mxu0
    %s671 = scalar_lea.vmem %s2, 4
    %v672 = vld [vmem:[%s671] sm:$0xf]
    %673 = vmatprep.subr.bf16.mxu0 %v460
    %674 = vmatpush1.bf16.msra.mxu0 %v459
    %675 = vmatprep.subr.bf16.mxu0 %v463
    %676 = vmatpush1.bf16.msra.mxu0 %v462
    %677 = vmatprep.subr.bf16.mxu0 %v466
    %678 = vmatpush1.bf16.msra.mxu0 %v465
    %679 = vmatprep.subr.bf16.mxu0 %v469
    %680 = vmatpush1.bf16.msra.mxu0 %v468
    %681 = vmatprep.subr.bf16.mxu0 %v472
    %682 = vmatpush1.bf16.msra.mxu0 %v471
    %683 = vmatprep.subr.bf16.mxu0 %v475
    %684 = vmatpush1.bf16.msra.mxu0 %v474
    %685 = vmatprep.subr.bf16.mxu0 %v478
    %686 = vmatpush1.bf16.msra.mxu0 %v477
    %687 = vmatprep.subr.bf16.mxu0 %v481
    %688 = vmatpush1.bf16.msra.mxu0 %v480
    %689 = vmatprep.subr.bf16.mxu0 0
    %690 = vmatpush1.bf16.msra.mxu0 0
    %691 = vmatprep.subr.bf16.mxu0 0
    %692 = vmatpush1.bf16.msra.mxu0 0
    %693 = vmatprep.subr.bf16.mxu0 0
    %694 = vmatpush1.bf16.msra.mxu0 0
    %695 = vmatprep.subr.bf16.mxu0 0
    %696 = vmatpush1.bf16.msra.mxu0 0
    %697 = vmatprep.subr.bf16.mxu0 0
    %698 = vmatpush1.bf16.msra.mxu0 0
    %699 = vmatprep.subr.bf16.mxu0 0
    %700 = vmatpush1.bf16.msra.mxu0 0
    %701 = vmatprep.subr.bf16.mxu0 0
    %702 = vmatpush1.bf16.msra.mxu0 0
    %703 = vmatprep.subr.bf16.mxu0 0
    %704 = vmatpush1.bf16.msra.mxu0 0
    %705 = vmatprep.mubr.bf16.mxu0 0
    %706 = vmatmul.mubr.bf16.gmra.mrb[0].mxu0 %v672
    %v707 = vpop.f32.mrb[0].mxu0
    %v708 = vadd.f32 %v367, %v707
    %v709 = vpop.f32.mrb[0].mxu0
    %v710 = vadd.f32 %v371, %v709
    %v711 = vpop.f32.mrb[0].mxu0
    %v712 = vpop.f32.mrb[0].mxu0
    %713 = vdwg.mxu0
    %714 = vmatprep.subr.bf16.mxu0 0
    %715 = vmatpush1.bf16.msra.mxu0 %v461
    %716 = vmatprep.subr.bf16.mxu0 0
    %717 = vmatpush1.bf16.msra.mxu0 %v464
    %718 = vmatprep.subr.bf16.mxu0 0
    %719 = vmatpush1.bf16.msra.mxu0 %v467
    %720 = vmatprep.subr.bf16.mxu0 0
    %721 = vmatpush1.bf16.msra.mxu0 %v470
    %722 = vmatprep.subr.bf16.mxu0 0
    %723 = vmatpush1.bf16.msra.mxu0 %v473
    %724 = vmatprep.subr.bf16.mxu0 0
    %725 = vmatpush1.bf16.msra.mxu0 %v476
    %726 = vmatprep.subr.bf16.mxu0 0
    %727 = vmatpush1.bf16.msra.mxu0 %v479
    %728 = vmatprep.subr.bf16.mxu0 0
    %729 = vmatpush1.bf16.msra.mxu0 %v482
    %730 = vmatprep.subr.bf16.mxu0 0
    %731 = vmatpush1.bf16.msra.mxu0 0
    %732 = vmatprep.subr.bf16.mxu0 0
    %733 = vmatpush1.bf16.msra.mxu0 0
    %734 = vmatprep.subr.bf16.mxu0 0
    %735 = vmatpush1.bf16.msra.mxu0 0
    %736 = vmatprep.subr.bf16.mxu0 0
    %737 = vmatpush1.bf16.msra.mxu0 0
    %738 = vmatprep.subr.bf16.mxu0 0
    %739 = vmatpush1.bf16.msra.mxu0 0
    %740 = vmatprep.subr.bf16.mxu0 0
    %741 = vmatpush1.bf16.msra.mxu0 0
    %742 = vmatprep.subr.bf16.mxu0 0
    %743 = vmatpush1.bf16.msra.mxu0 0
    %744 = vmatprep.subr.bf16.mxu0 0
    %745 = vmatpush1.bf16.msra.mxu0 0
    %746 = vmatprep.mubr.bf16.mxu0 0
    %747 = vmatmul.mubr.bf16.gmra.mrb[0].mxu0 %v672
    %v748 = vpop.f32.mrb[0].mxu0
    %v749 = vadd.f32 %v375, %v748
    %v750 = vpop.f32.mrb[0].mxu0
    %v751 = vpop.f32.mrb[0].mxu0
    %v752 = vpop.f32.mrb[0].mxu0
    %753 = vdwg.mxu0
    %v754 = vld [vmem:[#allocation2] sm:$0xff]
    %v755 = vld [vmem:[#allocation2 + $0x8] sm:$0xff]
    %v756 = vld [vmem:[#allocation2 + $0x10] sm:$0xff]
    %v757 = vld [vmem:[#allocation2 + $0x18] sm:$0xff]
    %v758 = vld [vmem:[#allocation2 + $0x20] sm:$0xff]
    %v759 = vld [vmem:[#allocation2 + $0x28] sm:$0xff]
    %v760 = vld [vmem:[#allocation2 + $0x30] sm:$0xff]
    %v761 = vld [vmem:[#allocation2 + $0x38] sm:$0xff]
    %v762 = vld [vmem:[#allocation2 + $0x40] sm:$0xff]
    %v763 = vld [vmem:[#allocation2 + $0x48] sm:$0xff]
    %v764 = vld [vmem:[#allocation2 + $0x50] sm:$0xff]
    %v765 = vld [vmem:[#allocation2 + $0x58] sm:$0xff]
    %v766 = vld [vmem:[#allocation2 + $0x60] sm:$0xff]
    %v767 = vld [vmem:[#allocation2 + $0x68] sm:$0xff]
    %v768 = vld [vmem:[#allocation2 + $0x70] sm:$0xff]
    %v769 = vld [vmem:[#allocation2 + $0x78] sm:$0xff]
    %v770 = vld [vmem:[#allocation2 + $0x80] sm:$0xff]
    %v771 = vld [vmem:[#allocation2 + $0x88] sm:$0xff]
    %v772 = vld [vmem:[#allocation2 + $0x90] sm:$0xff]
    %v773 = vld [vmem:[#allocation2 + $0x98] sm:$0xff]
    %v774 = vld [vmem:[#allocation2 + $0xa0] sm:$0xff]
    %v775 = vld [vmem:[#allocation2 + $0xa8] sm:$0xff]
    %v776 = vld [vmem:[#allocation2 + $0xb0] sm:$0xff]
    %v777 = vld [vmem:[#allocation2 + $0xb8] sm:$0xff]
    %v778 = vld [vmem:[#allocation2 + $0xc0] sm:$0xff]
    %v779 = vld [vmem:[#allocation2 + $0xc8] sm:$0xff]
    %v780 = vld [vmem:[#allocation2 + $0xd0] sm:$0xff]
    %v781 = vld [vmem:[#allocation2 + $0xd8] sm:$0xff]
    %v782 = vld [vmem:[#allocation2 + $0xe0] sm:$0xff]
    %v783 = vld [vmem:[#allocation2 + $0xe8] sm:$0xff]
    %v784 = vld [vmem:[#allocation2 + $0xf0] sm:$0xff]
    %v785 = vld [vmem:[#allocation2 + $0xf8] sm:$0xff]
    %v786 = vld [vmem:[#allocation2 + $0x100] sm:$0xff]
    %v787 = vld [vmem:[#allocation2 + $0x108] sm:$0xff]
    %v788 = vld [vmem:[#allocation2 + $0x110] sm:$0xff]
    %v789 = vld [vmem:[#allocation2 + $0x118] sm:$0xff]
    %v790 = vld [vmem:[#allocation2 + $0x120] sm:$0xff]
    %v791 = vld [vmem:[#allocation2 + $0x128] sm:$0xff]
    %v792 = vld [vmem:[#allocation2 + $0x130] sm:$0xff]
    %v793 = vld [vmem:[#allocation2 + $0x138] sm:$0xff]
    %v794 = vld [vmem:[#allocation2 + $0x140] sm:$0xff]
    %v795 = vld [vmem:[#allocation2 + $0x148] sm:$0xff]
    %v796 = vld [vmem:[#allocation2 + $0x150] sm:$0xff]
    %v797 = vld [vmem:[#allocation2 + $0x158] sm:$0xff]
    %v798 = vld [vmem:[#allocation2 + $0x160] sm:$0xff]
    %v799 = vld [vmem:[#allocation2 + $0x168] sm:$0xff]
    %v800 = vld [vmem:[#allocation2 + $0x170] sm:$0xff]
    %v801 = vld [vmem:[#allocation2 + $0x178] sm:$0xff]
    %v802 = vld [vmem:[#allocation2 + $0x180] sm:$0xff]
    %v803 = vld [vmem:[#allocation2 + $0x188] sm:$0xff]
    %v804 = vld [vmem:[#allocation2 + $0x190] sm:$0xff]
    %v805 = vld [vmem:[#allocation2 + $0x198] sm:$0xff]
    %v806 = vld [vmem:[#allocation2 + $0x1a0] sm:$0xff]
    %v807 = vld [vmem:[#allocation2 + $0x1a8] sm:$0xff]
    %v808 = vld [vmem:[#allocation2 + $0x1b0] sm:$0xff]
    %v809 = vld [vmem:[#allocation2 + $0x1b8] sm:$0xff]
    %v810 = vld [vmem:[#allocation2 + $0x1c0] sm:$0xff]
    %v811 = vld [vmem:[#allocation2 + $0x1c8] sm:$0xff]
    %v812 = vld [vmem:[#allocation2 + $0x1d0] sm:$0xff]
    %v813 = vld [vmem:[#allocation2 + $0x1d8] sm:$0xff]
    %v814 = vld [vmem:[#allocation2 + $0x1e0] sm:$0xff]
    %v815 = vld [vmem:[#allocation2 + $0x1e8] sm:$0xff]
    %v816 = vld [vmem:[#allocation2 + $0x1f0] sm:$0xff]
    %v817 = vld [vmem:[#allocation2 + $0x1f8] sm:$0xff]
    %v818 = vld [vmem:[#allocation2 + $0x200] sm:$0xff]
    %v819 = vld [vmem:[#allocation2 + $0x208] sm:$0xff]
    %v820 = vld [vmem:[#allocation2 + $0x210] sm:$0xff]
    %v821 = vld [vmem:[#allocation2 + $0x218] sm:$0xff]
    %v822 = vld [vmem:[#allocation2 + $0x220] sm:$0xff]
    %v823 = vld [vmem:[#allocation2 + $0x228] sm:$0xff]
    %v824 = vld [vmem:[#allocation2 + $0x230] sm:$0xff]
    %v825 = vld [vmem:[#allocation2 + $0x238] sm:$0xff]
    %v826 = vld [vmem:[#allocation2 + $0x240] sm:$0xff]
    %v827 = vld [vmem:[#allocation2 + $0x248] sm:$0xff]
    %v828 = vld [vmem:[#allocation2 + $0x250] sm:$0xff]
    %v829 = vld [vmem:[#allocation2 + $0x258] sm:$0xff]
    %v830 = vld [vmem:[#allocation2 + $0x260] sm:$0xff]
    %v831 = vld [vmem:[#allocation2 + $0x268] sm:$0xff]
    %v832 = vld [vmem:[#allocation2 + $0x270] sm:$0xff]
    %v833 = vld [vmem:[#allocation2 + $0x278] sm:$0xff]
    %v834 = vld [vmem:[#allocation2 + $0x280] sm:$0xff]
    %v835 = vld [vmem:[#allocation2 + $0x288] sm:$0xff]
    %v836 = vld [vmem:[#allocation2 + $0x290] sm:$0xff]
    %v837 = vld [vmem:[#allocation2 + $0x298] sm:$0xff]
    %v838 = vld [vmem:[#allocation2 + $0x2a0] sm:$0xff]
    %v839 = vld [vmem:[#allocation2 + $0x2a8] sm:$0xff]
    %v840 = vld [vmem:[#allocation2 + $0x2b0] sm:$0xff]
    %v841 = vld [vmem:[#allocation2 + $0x2b8] sm:$0xff]
    %v842 = vld [vmem:[#allocation2 + $0x2c0] sm:$0xff]
    %v843 = vld [vmem:[#allocation2 + $0x2c8] sm:$0xff]
    %v844 = vld [vmem:[#allocation2 + $0x2d0] sm:$0xff]
    %v845 = vld [vmem:[#allocation2 + $0x2d8] sm:$0xff]
    %v846 = vld [vmem:[#allocation2 + $0x2e0] sm:$0xff]
    %v847 = vld [vmem:[#allocation2 + $0x2e8] sm:$0xff]
    %v848 = vld [vmem:[#allocation2 + $0x2f0] sm:$0xff]
    %v849 = vld [vmem:[#allocation2 + $0x2f8] sm:$0xff]
    %v850 = vld [vmem:[#allocation2 + $0x300] sm:$0xff]
    %v851 = vld [vmem:[#allocation2 + $0x308] sm:$0xff]
    %v852 = vld [vmem:[#allocation2 + $0x310] sm:$0xff]
    %v853 = vld [vmem:[#allocation2 + $0x318] sm:$0xff]
    %v854 = vld [vmem:[#allocation2 + $0x320] sm:$0xff]
    %v855 = vld [vmem:[#allocation2 + $0x328] sm:$0xff]
    %v856 = vld [vmem:[#allocation2 + $0x330] sm:$0xff]
    %v857 = vld [vmem:[#allocation2 + $0x338] sm:$0xff]
    %v858 = vld [vmem:[#allocation2 + $0x340] sm:$0xff]
    %v859 = vld [vmem:[#allocation2 + $0x348] sm:$0xff]
    %v860 = vld [vmem:[#allocation2 + $0x350] sm:$0xff]
    %v861 = vld [vmem:[#allocation2 + $0x358] sm:$0xff]
    %v862 = vld [vmem:[#allocation2 + $0x360] sm:$0xff]
    %v863 = vld [vmem:[#allocation2 + $0x368] sm:$0xff]
    %v864 = vld [vmem:[#allocation2 + $0x370] sm:$0xff]
    %v865 = vld [vmem:[#allocation2 + $0x378] sm:$0xff]
    %v866 = vld [vmem:[#allocation2 + $0x380] sm:$0xff]
    %v867 = vld [vmem:[#allocation2 + $0x388] sm:$0xff]
    %v868 = vld [vmem:[#allocation2 + $0x390] sm:$0xff]
    %v869 = vld [vmem:[#allocation2 + $0x398] sm:$0xff]
    %v870 = vld [vmem:[#allocation2 + $0x3a0] sm:$0xff]
    %v871 = vld [vmem:[#allocation2 + $0x3a8] sm:$0xff]
    %v872 = vld [vmem:[#allocation2 + $0x3b0] sm:$0xff]
    %v873 = vld [vmem:[#allocation2 + $0x3b8] sm:$0xff]
    %v874 = vld [vmem:[#allocation2 + $0x3c0] sm:$0xff]
    %v875 = vld [vmem:[#allocation2 + $0x3c8] sm:$0xff]
    %v876 = vld [vmem:[#allocation2 + $0x3d0] sm:$0xff]
    %v877 = vld [vmem:[#allocation2 + $0x3d8] sm:$0xff]
    %v878 = vld [vmem:[#allocation2 + $0x3e0] sm:$0xff]
    %v879 = vld [vmem:[#allocation2 + $0x3e8] sm:$0xff]
    %v880 = vld [vmem:[#allocation2 + $0x3f0] sm:$0xff]
    %v881 = vld [vmem:[#allocation2 + $0x3f8] sm:$0xff]
    %v882 = vld [vmem:[#allocation2 + $0x400] sm:$0xff]
    %v883 = vld [vmem:[#allocation2 + $0x408] sm:$0xff]
    %v884 = vld [vmem:[#allocation2 + $0x410] sm:$0xff]
    %v885 = vld [vmem:[#allocation2 + $0x418] sm:$0xff]
    %v886 = vld [vmem:[#allocation2 + $0x420] sm:$0xff]
    %v887 = vld [vmem:[#allocation2 + $0x428] sm:$0xff]
    %v888 = vld [vmem:[#allocation2 + $0x430] sm:$0xff]
    %v889 = vld [vmem:[#allocation2 + $0x438] sm:$0xff]
    %v890 = vld [vmem:[#allocation2 + $0x440] sm:$0xff]
    %v891 = vld [vmem:[#allocation2 + $0x448] sm:$0xff]
    %v892 = vld [vmem:[#allocation2 + $0x450] sm:$0xff]
    %v893 = vld [vmem:[#allocation2 + $0x458] sm:$0xff]
    %v894 = vld [vmem:[#allocation2 + $0x460] sm:$0xff]
    %v895 = vld [vmem:[#allocation2 + $0x468] sm:$0xff]
    %v896 = vld [vmem:[#allocation2 + $0x470] sm:$0xff]
    %v897 = vld [vmem:[#allocation2 + $0x478] sm:$0xff]
    %v898 = vld [vmem:[#allocation2 + $0x480] sm:$0xff]
    %v899 = vld [vmem:[#allocation2 + $0x488] sm:$0xff]
    %v900 = vld [vmem:[#allocation2 + $0x490] sm:$0xff]
    %v901 = vld [vmem:[#allocation2 + $0x498] sm:$0xff]
    %v902 = vld [vmem:[#allocation2 + $0x4a0] sm:$0xff]
    %v903 = vld [vmem:[#allocation2 + $0x4a8] sm:$0xff]
    %v904 = vld [vmem:[#allocation2 + $0x4b0] sm:$0xff]
    %v905 = vld [vmem:[#allocation2 + $0x4b8] sm:$0xff]
    %v906 = vld [vmem:[#allocation2 + $0x4c0] sm:$0xff]
    %v907 = vld [vmem:[#allocation2 + $0x4c8] sm:$0xff]
    %v908 = vld [vmem:[#allocation2 + $0x4d0] sm:$0xff]
    %v909 = vld [vmem:[#allocation2 + $0x4d8] sm:$0xff]
    %v910 = vld [vmem:[#allocation2 + $0x4e0] sm:$0xff]
    %v911 = vld [vmem:[#allocation2 + $0x4e8] sm:$0xff]
    %v912 = vld [vmem:[#allocation2 + $0x4f0] sm:$0xff]
    %v913 = vld [vmem:[#allocation2 + $0x4f8] sm:$0xff]
    %v914 = vld [vmem:[#allocation2 + $0x500] sm:$0xff]
    %v915 = vld [vmem:[#allocation2 + $0x508] sm:$0xff]
    %v916 = vld [vmem:[#allocation2 + $0x510] sm:$0xff]
    %v917 = vld [vmem:[#allocation2 + $0x518] sm:$0xff]
    %v918 = vld [vmem:[#allocation2 + $0x520] sm:$0xff]
    %v919 = vld [vmem:[#allocation2 + $0x528] sm:$0xff]
    %v920 = vld [vmem:[#allocation2 + $0x530] sm:$0xff]
    %v921 = vld [vmem:[#allocation2 + $0x538] sm:$0xff]
    %v922 = vld [vmem:[#allocation2 + $0x540] sm:$0xff]
    %v923 = vld [vmem:[#allocation2 + $0x548] sm:$0xff]
    %v924 = vld [vmem:[#allocation2 + $0x550] sm:$0xff]
    %v925 = vld [vmem:[#allocation2 + $0x558] sm:$0xff]
    %v926 = vld [vmem:[#allocation2 + $0x560] sm:$0xff]
    %v927 = vld [vmem:[#allocation2 + $0x568] sm:$0xff]
    %v928 = vld [vmem:[#allocation2 + $0x570] sm:$0xff]
    %v929 = vld [vmem:[#allocation2 + $0x578] sm:$0xff]
    %v930 = vld [vmem:[#allocation2 + $0x580] sm:$0xff]
    %v931 = vld [vmem:[#allocation2 + $0x588] sm:$0xff]
    %v932 = vld [vmem:[#allocation2 + $0x590] sm:$0xff]
    %v933 = vld [vmem:[#allocation2 + $0x598] sm:$0xff]
    %v934 = vld [vmem:[#allocation2 + $0x5a0] sm:$0xff]
    %v935 = vld [vmem:[#allocation2 + $0x5a8] sm:$0xff]
    %v936 = vld [vmem:[#allocation2 + $0x5b0] sm:$0xff]
    %v937 = vld [vmem:[#allocation2 + $0x5b8] sm:$0xff]
    %v938 = vld [vmem:[#allocation2 + $0x5c0] sm:$0xff]
    %v939 = vld [vmem:[#allocation2 + $0x5c8] sm:$0xff]
    %v940 = vld [vmem:[#allocation2 + $0x5d0] sm:$0xff]
    %v941 = vld [vmem:[#allocation2 + $0x5d8] sm:$0xff]
    %v942 = vld [vmem:[#allocation2 + $0x5e0] sm:$0xff]
    %v943 = vld [vmem:[#allocation2 + $0x5e8] sm:$0xff]
    %v944 = vld [vmem:[#allocation2 + $0x5f0] sm:$0xff]
    %v945 = vld [vmem:[#allocation2 + $0x5f8] sm:$0xff]
    %v946 = vld [vmem:[%s7] sm:$0x1]
    %v948 = vlaneseq
    %v949 = vshrl.u32 %v948, 7
    %v950 = vsub.s32 0, %v949
    %v951 = vrot.slane %v946, %v950
    %v953 = vld [vmem:[%s8] sm:$0x1]
    %v955 = vlaneseq
    %v956 = vshrl.u32 %v955, 7
    %v957 = vsub.s32 0, %v956
    %v958 = vrot.slane %v953, %v957
    %v960 = vld [vmem:[%s0] sm:$0xff]
    %v961 = vsub.s32 %v960, 1
    %v962 = vxor.u32 %v283, 2147483648
    %v963 = vmul.f32 %v962, 1.442695
    %v964 = vpow.pop %v963
    %v965 = vadd.f32 %v964, 1.0
    %v966 = vrcp.pop %v965
    %v967 = vmul.f32 1.0, %v966
    %v968 = vxor.u32 %v285, 2147483648
    %v969 = vmul.f32 %v968, 1.442695
    %v970 = vpow.pop %v969
    %v971 = vadd.f32 %v970, 1.0
    %v972 = vrcp.pop %v971
    %v973 = vmul.f32 1.0, %v972
    %v974 = vmul.f32 %v967, %v951
    %v975 = vadd.f32 %v324, %v974
    %v976 = vtanh.pop %v975
    %v977 = vsub.f32 1.0, %v973
    %v978 = vmul.f32 %v977, %v976
    %v979 = vxor.u32 %v542, 2147483648
    %v980 = vmul.f32 %v979, 1.442695
    %v981 = vpow.pop %v980
    %v982 = vadd.f32 %v981, 1.0
    %v983 = vrcp.pop %v982
    %v984 = vmul.f32 1.0, %v983
    %v985 = vxor.u32 %v544, 2147483648
    %v986 = vmul.f32 %v985, 1.442695
    %v987 = vpow.pop %v986
    %v988 = vadd.f32 %v987, 1.0
    %v989 = vrcp.pop %v988
    %v990 = vmul.f32 1.0, %v989
    %v991 = vmul.f32 %v984, %v958
    %v992 = vadd.f32 %v583, %v991
    %v993 = vtanh.pop %v992
    %v994 = vsub.f32 1.0, %v990
    %v995 = vmul.f32 %v994, %v993
    %vm996 = vcmp.eq.s32.totalorder %v961, 0
    %v997 = vsel %vm996, 1, 0
    %998 = vset.pattern.permute.xlu0 0
    %999 = vperm.xlu0 %998, %v997
    %v1000 = vpop.permute.xlu0 %999
    %vm1001 = vcmp.eq.s32.totalorder %v1000, 1
    %v1002 = vsel %vm1001, %v978, 0.0
    %v1003 = vsel %vm1001, %v995, 0.0
    %1004 = vmatprep.subr.mxu0 %v755
    %1005 = vmatpush1.msra.mxu0 %v754
    %1006 = vmatprep.subr.mxu0 %v761
    %1007 = vmatpush1.msra.mxu0 %v760
    %1008 = vmatprep.subr.mxu0 %v767
    %1009 = vmatpush1.msra.mxu0 %v766
    %1010 = vmatprep.subr.mxu0 %v773
    %1011 = vmatpush1.msra.mxu0 %v772
    %1012 = vmatprep.subr.mxu0 %v779
    %1013 = vmatpush1.msra.mxu0 %v778
    %1014 = vmatprep.subr.mxu0 %v785
    %1015 = vmatpush1.msra.mxu0 %v784
    %1016 = vmatprep.subr.mxu0 %v791
    %1017 = vmatpush1.msra.mxu0 %v790
    %1018 = vmatprep.subr.mxu0 %v797
    %1019 = vmatpush1.msra.mxu0 %v796
    %1020 = vmatprep.subr.mxu0 %v803
    %1021 = vmatpush1.msra.mxu0 %v802
    %1022 = vmatprep.subr.mxu0 %v809
    %1023 = vmatpush1.msra.mxu0 %v808
    %1024 = vmatprep.subr.mxu0 %v815
    %1025 = vmatpush1.msra.mxu0 %v814
    %1026 = vmatprep.subr.mxu0 %v821
    %1027 = vmatpush1.msra.mxu0 %v820
    %1028 = vmatprep.subr.mxu0 %v827
    %1029 = vmatpush1.msra.mxu0 %v826
    %1030 = vmatprep.subr.mxu0 %v833
    %1031 = vmatpush1.msra.mxu0 %v832
    %1032 = vmatprep.subr.mxu0 %v839
    %1033 = vmatpush1.msra.mxu0 %v838
    %1034 = vmatprep.subr.mxu0 %v845
    %1035 = vmatpush1.msra.mxu0 %v844
    %1036 = vmatprep.subr.mxu0 %v851
    %1037 = vmatpush1.msra.mxu0 %v850
    %1038 = vmatprep.subr.mxu0 %v857
    %1039 = vmatpush1.msra.mxu0 %v856
    %1040 = vmatprep.subr.mxu0 %v863
    %1041 = vmatpush1.msra.mxu0 %v862
    %1042 = vmatprep.subr.mxu0 %v869
    %1043 = vmatpush1.msra.mxu0 %v868
    %1044 = vmatprep.subr.mxu0 %v875
    %1045 = vmatpush1.msra.mxu0 %v874
    %1046 = vmatprep.subr.mxu0 %v881
    %1047 = vmatpush1.msra.mxu0 %v880
    %1048 = vmatprep.subr.mxu0 %v887
    %1049 = vmatpush1.msra.mxu0 %v886
    %1050 = vmatprep.subr.mxu0 %v893
    %1051 = vmatpush1.msra.mxu0 %v892
    %1052 = vmatprep.subr.mxu0 %v899
    %1053 = vmatpush1.msra.mxu0 %v898
    %1054 = vmatprep.subr.mxu0 %v905
    %1055 = vmatpush1.msra.mxu0 %v904
    %1056 = vmatprep.subr.mxu0 %v911
    %1057 = vmatpush1.msra.mxu0 %v910
    %1058 = vmatprep.subr.mxu0 %v917
    %1059 = vmatpush1.msra.mxu0 %v916
    %1060 = vmatprep.subr.mxu0 %v923
    %1061 = vmatpush1.msra.mxu0 %v922
    %1062 = vmatprep.subr.mxu0 %v929
    %1063 = vmatpush1.msra.mxu0 %v928
    %1064 = vmatprep.subr.mxu0 %v935
    %1065 = vmatpush1.msra.mxu0 %v934
    %1066 = vmatprep.subr.mxu0 %v941
    %1067 = vmatpush1.msra.mxu0 %v940
    %1068 = vmatprep.mubr.f32.mxu0 %v995
    %1069 = vmatmul.mubr.f32.gmra.mrb[0].mxu0 %v978
    %v1070 = vpop.f32.mrb[0].mxu0
    %v1071 = vadd.f32 0.0, %v1070
    %v1072 = vpop.f32.mrb[0].mxu0
    %v1073 = vadd.f32 0.0, %v1072
    %1074 = vdwg.mxu0
    %1075 = vmatprep.subr.mxu0 %v757
    %1076 = vmatpush1.msra.mxu0 %v756
    %1077 = vmatprep.subr.mxu0 %v763
    %1078 = vmatpush1.msra.mxu0 %v762
    %1079 = vmatprep.subr.mxu0 %v769
    %1080 = vmatpush1.msra.mxu0 %v768
    %1081 = vmatprep.subr.mxu0 %v775
    %1082 = vmatpush1.msra.mxu0 %v774
    %1083 = vmatprep.subr.mxu0 %v781
    %1084 = vmatpush1.msra.mxu0 %v780
    %1085 = vmatprep.subr.mxu0 %v787
    %1086 = vmatpush1.msra.mxu0 %v786
    %1087 = vmatprep.subr.mxu0 %v793
    %1088 = vmatpush1.msra.mxu0 %v792
    %1089 = vmatprep.subr.mxu0 %v799
    %1090 = vmatpush1.msra.mxu0 %v798
    %1091 = vmatprep.subr.mxu0 %v805
    %1092 = vmatpush1.msra.mxu0 %v804
    %1093 = vmatprep.subr.mxu0 %v811
    %1094 = vmatpush1.msra.mxu0 %v810
    %1095 = vmatprep.subr.mxu0 %v817
    %1096 = vmatpush1.msra.mxu0 %v816
    %1097 = vmatprep.subr.mxu0 %v823
    %1098 = vmatpush1.msra.mxu0 %v822
    %1099 = vmatprep.subr.mxu0 %v829
    %1100 = vmatpush1.msra.mxu0 %v828
    %1101 = vmatprep.subr.mxu0 %v835
    %1102 = vmatpush1.msra.mxu0 %v834
    %1103 = vmatprep.subr.mxu0 %v841
    %1104 = vmatpush1.msra.mxu0 %v840
    %1105 = vmatprep.subr.mxu0 %v847
    %1106 = vmatpush1.msra.mxu0 %v846
    %1107 = vmatprep.subr.mxu0 %v853
    %1108 = vmatpush1.msra.mxu0 %v852
    %1109 = vmatprep.subr.mxu0 %v859
    %1110 = vmatpush1.msra.mxu0 %v858
    %1111 = vmatprep.subr.mxu0 %v865
    %1112 = vmatpush1.msra.mxu0 %v864
    %1113 = vmatprep.subr.mxu0 %v871
    %1114 = vmatpush1.msra.mxu0 %v870
    %1115 = vmatprep.subr.mxu0 %v877
    %1116 = vmatpush1.msra.mxu0 %v876
    %1117 = vmatprep.subr.mxu0 %v883
    %1118 = vmatpush1.msra.mxu0 %v882
    %1119 = vmatprep.subr.mxu0 %v889
    %1120 = vmatpush1.msra.mxu0 %v888
    %1121 = vmatprep.subr.mxu0 %v895
    %1122 = vmatpush1.msra.mxu0 %v894
    %1123 = vmatprep.subr.mxu0 %v901
    %1124 = vmatpush1.msra.mxu0 %v900
    %1125 = vmatprep.subr.mxu0 %v907
    %1126 = vmatpush1.msra.mxu0 %v906
    %1127 = vmatprep.subr.mxu0 %v913
    %1128 = vmatpush1.msra.mxu0 %v912
    %1129 = vmatprep.subr.mxu0 %v919
    %1130 = vmatpush1.msra.mxu0 %v918
    %1131 = vmatprep.subr.mxu0 %v925
    %1132 = vmatpush1.msra.mxu0 %v924
    %1133 = vmatprep.subr.mxu0 %v931
    %1134 = vmatpush1.msra.mxu0 %v930
    %1135 = vmatprep.subr.mxu0 %v937
    %1136 = vmatpush1.msra.mxu0 %v936
    %1137 = vmatprep.subr.mxu0 %v943
    %1138 = vmatpush1.msra.mxu0 %v942
    %1139 = vmatprep.mubr.f32.mxu0 %v995
    %1140 = vmatmul.mubr.f32.gmra.mrb[0].mxu0 %v978
    %v1141 = vpop.f32.mrb[0].mxu0
    %v1142 = vadd.f32 0.0, %v1141
    %v1143 = vpop.f32.mrb[0].mxu0
    %v1144 = vadd.f32 0.0, %v1143
    %1145 = vdwg.mxu0
    %1146 = vmatprep.subr.mxu0 %v759
    %1147 = vmatpush1.msra.mxu0 %v758
    %1148 = vmatprep.subr.mxu0 %v765
    %1149 = vmatpush1.msra.mxu0 %v764
    %1150 = vmatprep.subr.mxu0 %v771
    %1151 = vmatpush1.msra.mxu0 %v770
    %1152 = vmatprep.subr.mxu0 %v777
    %1153 = vmatpush1.msra.mxu0 %v776
    %1154 = vmatprep.subr.mxu0 %v783
    %1155 = vmatpush1.msra.mxu0 %v782
    %1156 = vmatprep.subr.mxu0 %v789
    %1157 = vmatpush1.msra.mxu0 %v788
    %1158 = vmatprep.subr.mxu0 %v795
    %1159 = vmatpush1.msra.mxu0 %v794
    %1160 = vmatprep.subr.mxu0 %v801
    %1161 = vmatpush1.msra.mxu0 %v800
    %1162 = vmatprep.subr.mxu0 %v807
    %1163 = vmatpush1.msra.mxu0 %v806
    %1164 = vmatprep.subr.mxu0 %v813
    %1165 = vmatpush1.msra.mxu0 %v812
    %1166 = vmatprep.subr.mxu0 %v819
    %1167 = vmatpush1.msra.mxu0 %v818
    %1168 = vmatprep.subr.mxu0 %v825
    %1169 = vmatpush1.msra.mxu0 %v824
    %1170 = vmatprep.subr.mxu0 %v831
    %1171 = vmatpush1.msra.mxu0 %v830
    %1172 = vmatprep.subr.mxu0 %v837
    %1173 = vmatpush1.msra.mxu0 %v836
    %1174 = vmatprep.subr.mxu0 %v843
    %1175 = vmatpush1.msra.mxu0 %v842
    %1176 = vmatprep.subr.mxu0 %v849
    %1177 = vmatpush1.msra.mxu0 %v848
    %1178 = vmatprep.subr.mxu0 %v855
    %1179 = vmatpush1.msra.mxu0 %v854
    %1180 = vmatprep.subr.mxu0 %v861
    %1181 = vmatpush1.msra.mxu0 %v860
    %1182 = vmatprep.subr.mxu0 %v867
    %1183 = vmatpush1.msra.mxu0 %v866
    %1184 = vmatprep.subr.mxu0 %v873
    %1185 = vmatpush1.msra.mxu0 %v872
    %1186 = vmatprep.subr.mxu0 %v879
    %1187 = vmatpush1.msra.mxu0 %v878
    %1188 = vmatprep.subr.mxu0 %v885
    %1189 = vmatpush1.msra.mxu0 %v884
    %1190 = vmatprep.subr.mxu0 %v891
    %1191 = vmatpush1.msra.mxu0 %v890
    %1192 = vmatprep.subr.mxu0 %v897
    %1193 = vmatpush1.msra.mxu0 %v896
    %1194 = vmatprep.subr.mxu0 %v903
    %1195 = vmatpush1.msra.mxu0 %v902
    %1196 = vmatprep.subr.mxu0 %v909
    %1197 = vmatpush1.msra.mxu0 %v908
    %1198 = vmatprep.subr.mxu0 %v915
    %1199 = vmatpush1.msra.mxu0 %v914
    %1200 = vmatprep.subr.mxu0 %v921
    %1201 = vmatpush1.msra.mxu0 %v920
    %1202 = vmatprep.subr.mxu0 %v927
    %1203 = vmatpush1.msra.mxu0 %v926
    %1204 = vmatprep.subr.mxu0 %v933
    %1205 = vmatpush1.msra.mxu0 %v932
    %1206 = vmatprep.subr.mxu0 %v939
    %1207 = vmatpush1.msra.mxu0 %v938
    %1208 = vmatprep.subr.mxu0 %v945
    %1209 = vmatpush1.msra.mxu0 %v944
    %1210 = vmatprep.mubr.f32.mxu0 %v995
    %1211 = vmatmul.mubr.f32.gmra.mrb[0].mxu0 %v978
    %v1212 = vpop.f32.mrb[0].mxu0
    %v1213 = vadd.f32 0.0, %v1212
    %v1214 = vpop.f32.mrb[0].mxu0
    %v1215 = vadd.f32 0.0, %v1214
    %1216 = vdwg.mxu0
    %v1217 = vadd.f32 %v625, %v1071
    %v1218 = vxor.u32 %v1217, 2147483648
    %v1219 = vmul.f32 %v1218, 1.442695
    %v1220 = vpow.pop %v1219
    %v1221 = vadd.f32 %v1220, 1.0
    %v1222 = vrcp.pop %v1221
    %v1223 = vmul.f32 1.0, %v1222
    %v1224 = vadd.f32 %v627, %v1073
    %v1225 = vxor.u32 %v1224, 2147483648
    %v1226 = vmul.f32 %v1225, 1.442695
    %v1227 = vpow.pop %v1226
    %v1228 = vadd.f32 %v1227, 1.0
    %v1229 = vrcp.pop %v1228
    %v1230 = vmul.f32 1.0, %v1229
    %v1231 = vadd.f32 %v1142, %v951
    %v1232 = vmul.f32 %v1223, %v1231
    %v1233 = vadd.f32 %v666, %v1232
    %v1234 = vtanh.pop %v1233
    %v1235 = vsub.f32 1.0, %v1230
    %v1236 = vmul.f32 %v1235, %v1234
    %v1237 = vmul.f32 %v1230, %v978
    %v1238 = vadd.f32 %v1236, %v1237
    %v1239 = vadd.f32 %v708, %v1144
    %v1240 = vxor.u32 %v1239, 2147483648
    %v1241 = vmul.f32 %v1240, 1.442695
    %v1242 = vpow.pop %v1241
    %v1243 = vadd.f32 %v1242, 1.0
    %v1244 = vrcp.pop %v1243
    %v1245 = vmul.f32 1.0, %v1244
    %v1246 = vadd.f32 %v710, %v1213
    %v1247 = vxor.u32 %v1246, 2147483648
    %v1248 = vmul.f32 %v1247, 1.442695
    %v1249 = vpow.pop %v1248
    %v1250 = vadd.f32 %v1249, 1.0
    %v1251 = vrcp.pop %v1250
    %v1252 = vmul.f32 1.0, %v1251
    %v1253 = vadd.f32 %v1215, %v958
    %v1254 = vmul.f32 %v1245, %v1253
    %v1255 = vadd.f32 %v749, %v1254
    %v1256 = vtanh.pop %v1255
    %v1257 = vsub.f32 1.0, %v1252
    %v1258 = vmul.f32 %v1257, %v1256
    %v1259 = vmul.f32 %v1252, %v995
    %v1260 = vadd.f32 %v1258, %v1259
    %vm1261 = vcmp.eq.s32.totalorder %v961, 1
    %v1262 = vsel %vm1261, 1, 0
    %1263 = vset.pattern.permute.xlu0 0
    %1264 = vperm.xlu0 %1263, %v1262
    %v1265 = vpop.permute.xlu0 %1264
    %vm1266 = vcmp.eq.s32.totalorder %v1265, 1
    %v1267 = vsel %vm1266, %v1238, %v1002
    %v1268 = vsel %vm1266, %v1260, %v1003
    %v1269 = vld [vmem:[%s10] sm:$0xf]
    %v1270 = vld [vmem:[%s10 + $0x4] sm:$0xf]
    %v1271 = vld [vmem:[%s10 + $0x8] sm:$0xf]
    %v1272 = vld [vmem:[%s10 + $0xc] sm:$0xf]
    %v1273 = vld [vmem:[%s10 + $0x10] sm:$0xf]
    %v1274 = vld [vmem:[%s10 + $0x14] sm:$0xf]
    %v1275 = vld [vmem:[%s10 + $0x18] sm:$0xf]
    %v1276 = vld [vmem:[%s10 + $0x1c] sm:$0xf]
    %v1277 = vld [vmem:[%s10 + $0x20] sm:$0xf]
    %v1278 = vld [vmem:[%s10 + $0x24] sm:$0xf]
    %v1279 = vld [vmem:[%s10 + $0x28] sm:$0xf]
    %v1280 = vld [vmem:[%s10 + $0x2c] sm:$0xf]
    %v1281 = vld [vmem:[%s10 + $0x30] sm:$0xf]
    %v1282 = vld [vmem:[%s10 + $0x34] sm:$0xf]
    %v1283 = vld [vmem:[%s10 + $0x38] sm:$0xf]
    %v1284 = vld [vmem:[%s10 + $0x3c] sm:$0xf]
    %v1285 = vld [vmem:[%s10 + $0x40] sm:$0xf]
    %v1286 = vld [vmem:[%s10 + $0x44] sm:$0xf]
    %v1287 = vld [vmem:[%s10 + $0x48] sm:$0xf]
    %v1288 = vld [vmem:[%s10 + $0x4c] sm:$0xf]
    %v1289 = vld [vmem:[%s10 + $0x50] sm:$0xf]
    %v1290 = vld [vmem:[%s10 + $0x54] sm:$0xf]
    %v1291 = vld [vmem:[%s10 + $0x58] sm:$0xf]
    %v1292 = vld [vmem:[%s10 + $0x5c] sm:$0xf]
    %v1293 = vld [vmem:[%s10 + $0x60] sm:$0xf]
    %v1294 = vld [vmem:[%s10 + $0x64] sm:$0xf]
    %v1295 = vld [vmem:[%s10 + $0x68] sm:$0xf]
    %v1296 = vld [vmem:[%s10 + $0x6c] sm:$0xf]
    %v1297 = vld [vmem:[%s10 + $0x70] sm:$0xf]
    %v1298 = vld [vmem:[%s10 + $0x74] sm:$0xf]
    %v1299 = vld [vmem:[%s10 + $0x78] sm:$0xf]
    %v1300 = vld [vmem:[%s10 + $0x7c] sm:$0xf]
    %v1301 = vmax.f32 %v1267, 0.0
    %v1302 = vmax.f32 %v1268, 0.0
    %v1303 = vpack.c.bf16 %v1301, %v1301
    %v1304 = vpack.c.bf16 %v1302, %v1302
    %v1305 = vld [vmem:[%s11] sm:$0x1]
    %v1307 = vlaneseq
    %v1308 = vshrl.u32 %v1307, 7
    %v1309 = vsub.s32 0, %v1308
    %v1310 = vrot.slane %v1305, %v1309
    %v1344 = vunpack.c.l.b16 %v1269
    %v1345 = vunpack.c.l.b16 %v1270
    %v1346 = vunpack.c.l.b16 %v1271
    %v1347 = vunpack.c.l.b16 %v1272
    %v1348 = vunpack.c.l.b16 %v1273
    %v1349 = vunpack.c.l.b16 %v1274
    %v1350 = vunpack.c.l.b16 %v1275
    %v1351 = vunpack.c.l.b16 %v1276
    %v1352 = vunpack.c.l.b16 %v1277
    %v1353 = vunpack.c.l.b16 %v1278
    %v1354 = vunpack.c.l.b16 %v1279
    %v1355 = vunpack.c.l.b16 %v1280
    %v1356 = vunpack.c.l.b16 %v1281
    %v1357 = vunpack.c.l.b16 %v1282
    %v1358 = vunpack.c.l.b16 %v1283
    %v1359 = vunpack.c.l.b16 %v1284
    %v1360 = vunpack.c.l.b16 %v1285
    %v1361 = vunpack.c.l.b16 %v1286
    %v1362 = vunpack.c.l.b16 %v1287
    %v1363 = vunpack.c.l.b16 %v1288
    %v1364 = vunpack.c.l.b16 %v1289
    %v1365 = vunpack.c.l.b16 %v1290
    %v1366 = vunpack.c.l.b16 %v1291
    %v1367 = vunpack.c.l.b16 %v1292
    %v1368 = vunpack.c.l.b16 %v1293
    %v1369 = vunpack.c.l.b16 %v1294
    %v1370 = vunpack.c.l.b16 %v1295
    %v1371 = vunpack.c.l.b16 %v1296
    %v1372 = vunpack.c.l.b16 %v1297
    %v1373 = vunpack.c.l.b16 %v1298
    %v1374 = vunpack.c.l.b16 %v1299
    %v1375 = vunpack.c.l.b16 %v1300
    %v1376 = vpack.c.b16 %v1345, %v1344
    %v1377 = vpack.c.b16 %v1347, %v1346
    %v1378 = vpack.c.b16 %v1349, %v1348
    %v1379 = vpack.c.b16 %v1351, %v1350
    %v1380 = vpack.c.b16 %v1353, %v1352
    %v1381 = vpack.c.b16 %v1355, %v1354
    %v1382 = vpack.c.b16 %v1357, %v1356
    %v1383 = vpack.c.b16 %v1359, %v1358
    %v1384 = vpack.c.b16 %v1361, %v1360
    %v1385 = vpack.c.b16 %v1363, %v1362
    %v1386 = vpack.c.b16 %v1365, %v1364
    %v1387 = vpack.c.b16 %v1367, %v1366
    %v1388 = vpack.c.b16 %v1369, %v1368
    %v1389 = vpack.c.b16 %v1371, %v1370
    %v1390 = vpack.c.b16 %v1373, %v1372
    %v1391 = vpack.c.b16 %v1375, %v1374
    %1408 = vmatprep.subr.bf16.mxu0 0
    %1409 = vmatpush1.bf16.msra.mxu0 %v1376
    %1410 = vmatprep.subr.bf16.mxu0 0
    %1411 = vmatpush1.bf16.msra.mxu0 %v1377
    %1412 = vmatprep.subr.bf16.mxu0 0
    %1413 = vmatpush1.bf16.msra.mxu0 %v1378
    %1414 = vmatprep.subr.bf16.mxu0 0
    %1415 = vmatpush1.bf16.msra.mxu0 %v1379
    %1416 = vmatprep.subr.bf16.mxu0 0
    %1417 = vmatpush1.bf16.msra.mxu0 %v1380
    %1418 = vmatprep.subr.bf16.mxu0 0
    %1419 = vmatpush1.bf16.msra.mxu0 %v1381
    %1420 = vmatprep.subr.bf16.mxu0 0
    %1421 = vmatpush1.bf16.msra.mxu0 %v1382
    %1422 = vmatprep.subr.bf16.mxu0 0
    %1423 = vmatpush1.bf16.msra.mxu0 %v1383
    %1424 = vmatprep.subr.bf16.mxu0 0
    %1425 = vmatpush1.bf16.msra.mxu0 %v1384
    %1426 = vmatprep.subr.bf16.mxu0 0
    %1427 = vmatpush1.bf16.msra.mxu0 %v1385
    %1428 = vmatprep.subr.bf16.mxu0 0
    %1429 = vmatpush1.bf16.msra.mxu0 %v1386
    %1430 = vmatprep.subr.bf16.mxu0 0
    %1431 = vmatpush1.bf16.msra.mxu0 %v1387
    %1432 = vmatprep.subr.bf16.mxu0 0
    %1433 = vmatpush1.bf16.msra.mxu0 %v1388
    %1434 = vmatprep.subr.bf16.mxu0 0
    %1435 = vmatpush1.bf16.msra.mxu0 %v1389
    %1436 = vmatprep.subr.bf16.mxu0 0
    %1437 = vmatpush1.bf16.msra.mxu0 %v1390
    %1438 = vmatprep.subr.bf16.mxu0 0
    %1439 = vmatpush1.bf16.msra.mxu0 %v1391
    %1440 = vmatprep.mubr.bf16.mxu0 %v1304
    %1441 = vmatmul.mubr.bf16.gmra.mrb[0].mxu0 %v1303
    %v1442 = vpop.f32.mrb[0].mxu0
    %v1443 = vadd.f32 %v1310, %v1442
    %v1444 = vpop.f32.mrb[0].mxu0
    %v1445 = vpop.f32.mrb[0].mxu0
    %v1446 = vpop.f32.mrb[0].mxu0
    %1447 = vdwg.mxu0
    %v1448 = vmul.f32 %v1443, %v1443
    %1449 = vadd.xlane.f32.xlu0 %v1448
    %v1450 = vpop.xlane.xlu0 %1449
    %v1451 = vrsqrt.pop %v1450
    %v1452 = vmul.f32 %v1450, %v1451
    %vm1453 = vcmp.eq.f32.partialorder %v1450, inf
    %v1454 = vsel %vm1453, %v1450, %v1452
    %vm1455 = vcmp.eq.f32.partialorder %v1450, 0.0
    %v1456 = vand.u32 %v1450, 2147483648
    %v1457 = vsel %vm1455, %v1456, %v1454
    %v1458 = vadd.f32 %v1457, 1.0
    %v1459 = vrcp.pop %v1458
    %v1460 = vmul.f32 %v1443, %v1459
    %v1461 = vld [vmem:[%s12] sm:$0xf]
    %v1462 = vld [vmem:[%s12 + $0x4] sm:$0xf]
    %v1463 = vld [vmem:[%s12 + $0x8] sm:$0xf]
    %v1464 = vld [vmem:[%s12 + $0xc] sm:$0xf]
    %v1465 = vld [vmem:[%s12 + $0x10] sm:$0xf]
    %v1466 = vld [vmem:[%s12 + $0x14] sm:$0xf]
    %v1467 = vld [vmem:[%s12 + $0x18] sm:$0xf]
    %v1468 = vld [vmem:[%s12 + $0x1c] sm:$0xf]
    %v1469 = vld [vmem:[%s12 + $0x20] sm:$0xf]
    %v1470 = vld [vmem:[%s12 + $0x24] sm:$0xf]
    %v1471 = vld [vmem:[%s12 + $0x28] sm:$0xf]
    %v1472 = vld [vmem:[%s12 + $0x2c] sm:$0xf]
    %v1473 = vld [vmem:[%s12 + $0x30] sm:$0xf]
    %v1474 = vld [vmem:[%s12 + $0x34] sm:$0xf]
    %v1475 = vld [vmem:[%s12 + $0x38] sm:$0xf]
    %v1476 = vld [vmem:[%s12 + $0x3c] sm:$0xf]
    %v1477 = vpack.c.bf16 %v1460, %v1460
    %v1494 = vunpack.c.l.b16 %v1461
    %v1495 = vunpack.c.l.b16 %v1462
    %v1496 = vunpack.c.l.b16 %v1463
    %v1497 = vunpack.c.l.b16 %v1464
    %v1498 = vunpack.c.l.b16 %v1465
    %v1499 = vunpack.c.l.b16 %v1466
    %v1500 = vunpack.c.l.b16 %v1467
    %v1501 = vunpack.c.l.b16 %v1468
    %v1502 = vunpack.c.l.b16 %v1469
    %v1503 = vunpack.c.l.b16 %v1470
    %v1504 = vunpack.c.l.b16 %v1471
    %v1505 = vunpack.c.l.b16 %v1472
    %v1506 = vunpack.c.l.b16 %v1473
    %v1507 = vunpack.c.l.b16 %v1474
    %v1508 = vunpack.c.l.b16 %v1475
    %v1509 = vunpack.c.l.b16 %v1476
    %v1510 = vpack.c.b16 %v1495, %v1494
    %v1511 = vpack.c.b16 %v1497, %v1496
    %v1512 = vpack.c.b16 %v1499, %v1498
    %v1513 = vpack.c.b16 %v1501, %v1500
    %v1514 = vpack.c.b16 %v1503, %v1502
    %v1515 = vpack.c.b16 %v1505, %v1504
    %v1516 = vpack.c.b16 %v1507, %v1506
    %v1517 = vpack.c.b16 %v1509, %v1508
    %1526 = vmatprep.subr.bf16.mxu0 0
    %1527 = vmatpush1.bf16.xpose.msra.mxu0 %v1510
    %1528 = vmatprep.subr.bf16.mxu0 0
    %1529 = vmatpush1.bf16.xpose.msra.mxu0 %v1511
    %1530 = vmatprep.subr.bf16.mxu0 0
    %1531 = vmatpush1.bf16.xpose.msra.mxu0 %v1512
    %1532 = vmatprep.subr.bf16.mxu0 0
    %1533 = vmatpush1.bf16.xpose.msra.mxu0 %v1513
    %1534 = vmatprep.subr.bf16.mxu0 0
    %1535 = vmatpush1.bf16.xpose.msra.mxu0 %v1514
    %1536 = vmatprep.subr.bf16.mxu0 0
    %1537 = vmatpush1.bf16.xpose.msra.mxu0 %v1515
    %1538 = vmatprep.subr.bf16.mxu0 0
    %1539 = vmatpush1.bf16.xpose.msra.mxu0 %v1516
    %1540 = vmatprep.subr.bf16.mxu0 0
    %1541 = vmatpush1.bf16.xpose.msra.mxu0 %v1517
    %1542 = vmatprep.subr.bf16.mxu0 0
    %1543 = vmatpush1.bf16.xpose.msra.mxu0 0
    %1544 = vmatprep.subr.bf16.mxu0 0
    %1545 = vmatpush1.bf16.xpose.msra.mxu0 0
    %1546 = vmatprep.subr.bf16.mxu0 0
    %1547 = vmatpush1.bf16.xpose.msra.mxu0 0
    %1548 = vmatprep.subr.bf16.mxu0 0
    %1549 = vmatpush1.bf16.xpose.msra.mxu0 0
    %1550 = vmatprep.subr.bf16.mxu0 0
    %1551 = vmatpush1.bf16.xpose.msra.mxu0 0
    %1552 = vmatprep.subr.bf16.mxu0 0
    %1553 = vmatpush1.bf16.xpose.msra.mxu0 0
    %1554 = vmatprep.subr.bf16.mxu0 0
    %1555 = vmatpush1.bf16.xpose.msra.mxu0 0
    %1556 = vmatprep.subr.bf16.mxu0 0
    %1557 = vmatpush1.bf16.xpose.msra.mxu0 0
    %1558 = vmatprep.mubr.bf16.mxu0 0
    %1559 = vmatmul.mubr.bf16.gmra.mrb[0].mxu0 %v1477
    %v1560 = vpop.f32.mrb[0].mxu0
    %v1561 = vadd.f32 0.0, %v1560
    %v1562 = vpop.f32.mrb[0].mxu0
    %v1563 = vpop.f32.mrb[0].mxu0
    %v1564 = vpop.f32.mrb[0].mxu0
    %1565 = vdwg.mxu0
    %v1566 = vlaneseq
    %v1567 = vand.u32 %v1566, 127
    %vm1568 = vcmp.lt.s32.totalorder %v1567, 16
    %v1569 = vsel %vm1568, 1, 0
    %v1570 = vcvt.s32.f32 %v1569
    %1571 = vadd.xlane.f32.xlu0 %v1561
    %v1572 = vpop.xlane.xlu0 %1571
    %v1573 = vmul.f32 %v1572, 0.0625
    %v1574 = vsub.f32 %v1561, %v1573
    %v1575 = vmul.f32 %v1574, %v1570
    %v1576 = vmul.f32 %v1575, %v1575
    %1577 = vadd.xlane.f32.xlu0 %v1576
    %v1578 = vpop.xlane.xlu0 %1577
    %v1579 = vmul.f32 %v1578, 0.0625
    %v1580 = vadd.f32 %v1579, 1e-05
    %v1581 = vrsqrt.pop %v1580
    %v1582 = vmul.f32 %v1575, %v1581
    %v1583 = vld [vmem:[%s13] sm:$0x1]
    %v1585 = vlaneseq
    %v1586 = vshrl.u32 %v1585, 7
    %v1587 = vsub.s32 0, %v1586
    %v1588 = vrot.slane %v1583, %v1587
    %v1590 = vmul.f32 %v1582, %v1588
    %v1591 = vld [vmem:[%s14] sm:$0x1]
    %v1593 = vlaneseq
    %v1594 = vshrl.u32 %v1593, 7
    %v1595 = vsub.s32 0, %v1594
    %v1596 = vrot.slane %v1591, %v1595
    %v1598 = vadd.f32 %v1590, %v1596
    %1599 = vst [vmem:[%s16] sm:$0xff] %v1598
    %v1600 = vxor.u32 %v1598, 2147483648
    %v1601 = vmul.f32 %v1600, 1.442695
    %v1602 = vpow.pop %v1601
    %v1603 = vadd.f32 %v1602, 1.0
    %v1604 = vrcp.pop %v1603
    %v1605 = vmul.f32 1.0, %v1604
    %v1606 = vld [vmem:[%s15] sm:$0xff]
    %v1607 = vld [vmem:[%s15 + $0x8] sm:$0xff]
    %v1608 = vld [vmem:[%s15 + $0x10] sm:$0xff]
    %v1609 = vld [vmem:[%s15 + $0x18] sm:$0xff]
    %v1610 = vld [vmem:[%s15 + $0x20] sm:$0xff]
    %v1611 = vld [vmem:[%s15 + $0x28] sm:$0xff]
    %v1612 = vld [vmem:[%s15 + $0x30] sm:$0xff]
    %v1613 = vld [vmem:[%s15 + $0x38] sm:$0xff]
    %v1614 = vld [vmem:[%s15 + $0x40] sm:$0xff]
    %v1615 = vld [vmem:[%s15 + $0x48] sm:$0xff]
    %v1616 = vld [vmem:[%s15 + $0x50] sm:$0xff]
    %v1617 = vld [vmem:[%s15 + $0x58] sm:$0xff]
    %v1618 = vld [vmem:[%s15 + $0x60] sm:$0xff]
    %v1619 = vld [vmem:[%s15 + $0x68] sm:$0xff]
    %v1620 = vld [vmem:[%s15 + $0x70] sm:$0xff]
    %v1621 = vld [vmem:[%s15 + $0x78] sm:$0xff]
    %1622 = vmatprep.subr.mxu0 0.0
    %1623 = vmatpush1.msra.mxu0 %v1606
    %1624 = vmatprep.subr.mxu0 0.0
    %1625 = vmatpush1.msra.mxu0 %v1607
    %1626 = vmatprep.subr.mxu0 0.0
    %1627 = vmatpush1.msra.mxu0 %v1608
    %1628 = vmatprep.subr.mxu0 0.0
    %1629 = vmatpush1.msra.mxu0 %v1609
    %1630 = vmatprep.subr.mxu0 0.0
    %1631 = vmatpush1.msra.mxu0 %v1610
    %1632 = vmatprep.subr.mxu0 0.0
    %1633 = vmatpush1.msra.mxu0 %v1611
    %1634 = vmatprep.subr.mxu0 0.0
    %1635 = vmatpush1.msra.mxu0 %v1612
    %1636 = vmatprep.subr.mxu0 0.0
    %1637 = vmatpush1.msra.mxu0 %v1613
    %1638 = vmatprep.subr.mxu0 0.0
    %1639 = vmatpush1.msra.mxu0 %v1614
    %1640 = vmatprep.subr.mxu0 0.0
    %1641 = vmatpush1.msra.mxu0 %v1615
    %1642 = vmatprep.subr.mxu0 0.0
    %1643 = vmatpush1.msra.mxu0 %v1616
    %1644 = vmatprep.subr.mxu0 0.0
    %1645 = vmatpush1.msra.mxu0 %v1617
    %1646 = vmatprep.subr.mxu0 0.0
    %1647 = vmatpush1.msra.mxu0 %v1618
    %1648 = vmatprep.subr.mxu0 0.0
    %1649 = vmatpush1.msra.mxu0 %v1619
    %1650 = vmatprep.subr.mxu0 0.0
    %1651 = vmatpush1.msra.mxu0 %v1620
    %1652 = vmatprep.subr.mxu0 0.0
    %1653 = vmatpush1.msra.mxu0 %v1621
    %1654 = vmatprep.subr.mxu0 0.0
    %1655 = vmatpush1.msra.mxu0 0.0
    %1656 = vmatprep.subr.mxu0 0.0
    %1657 = vmatpush1.msra.mxu0 0.0
    %1658 = vmatprep.subr.mxu0 0.0
    %1659 = vmatpush1.msra.mxu0 0.0
    %1660 = vmatprep.subr.mxu0 0.0
    %1661 = vmatpush1.msra.mxu0 0.0
    %1662 = vmatprep.subr.mxu0 0.0
    %1663 = vmatpush1.msra.mxu0 0.0
    %1664 = vmatprep.subr.mxu0 0.0
    %1665 = vmatpush1.msra.mxu0 0.0
    %1666 = vmatprep.subr.mxu0 0.0
    %1667 = vmatpush1.msra.mxu0 0.0
    %1668 = vmatprep.subr.mxu0 0.0
    %1669 = vmatpush1.msra.mxu0 0.0
    %1670 = vmatprep.subr.mxu0 0.0
    %1671 = vmatpush1.msra.mxu0 0.0
    %1672 = vmatprep.subr.mxu0 0.0
    %1673 = vmatpush1.msra.mxu0 0.0
    %1674 = vmatprep.subr.mxu0 0.0
    %1675 = vmatpush1.msra.mxu0 0.0
    %1676 = vmatprep.subr.mxu0 0.0
    %1677 = vmatpush1.msra.mxu0 0.0
    %1678 = vmatprep.subr.mxu0 0.0
    %1679 = vmatpush1.msra.mxu0 0.0
    %1680 = vmatprep.subr.mxu0 0.0
    %1681 = vmatpush1.msra.mxu0 0.0
    %1682 = vmatprep.subr.mxu0 0.0
    %1683 = vmatpush1.msra.mxu0 0.0
    %1684 = vmatprep.subr.mxu0 0.0
    %1685 = vmatpush1.msra.mxu0 0.0
    %1686 = vmatprep.mubr.f32.mxu0 0.0
    %1687 = vmatmul.mubr.f32.gmra.mrb[0].mxu0 %v1605
    %v1688 = vpop.f32.mrb[0].mxu0
    %v1689 = vadd.f32 0.0, %v1688
    %v1690 = vpop.f32.mrb[0].mxu0
    %1691 = vdwg.mxu0
    %v1692 = vlaneseq
    %v1693 = vshrl.u32 %v1692, 7
    %s1694 = smul.u32 0, 8
    %s1695 = ssub.s32 4, %s1694
    %p1696 = scmp.gt.s32.totalorder %s1695, 0
    %s1697 = scalar_select %p1696, %s1695, 0
    %p1698 = scmp.lt.s32.totalorder %s1697, 8
    %s1699 = scalar_select %p1698, %s1697, 8
    %v1700 = vstv %s1699
    %vm1701 = vcmp.lt.s32.totalorder %v1693, %v1700
    %v1702 = vsel %vm1701, 1, 0
    %v1703 = vcvt.s32.f32 %v1702
    %v1704 = vmul.f32 %v1605, %v1689
    %1705 = vadd.xlane.f32.xlu0 %v1704
    %v1706 = vpop.xlane.xlu0 %1705
    %v1707 = vmul.f32 %v1706, 0.0005
    %v1708 = vmul.f32 %v1707, %v1703
    %1709 = vst [vmem:[%s17] sm:$0xff] %v1708
    // Predicated region
    $region70: #{model_forward.1} parent=1 // pred_check
      _
    $region71: #{model_forward.1} parent=1 // pred_check_branch
      %1711 = sbr.rel (0) target = $region73
    $region72: #{model_forward.1} parent=1 // pred_region
      _
    $region73: #{model_forward.1} parent=1 // pred_fallthru
      _
    // Predicated region
    $region74: #{model_forward.1} parent=1 // pred_check
      _
    $region75: #{model_forward.1} parent=1 // pred_check_branch
      %1713 = sbr.rel (0) target = $region77
    $region76: #{model_forward.1} parent=1 // pred_region
      _
    $region77: #{model_forward.1} parent=1 // pred_fallthru
      _
    // Predicated region
    $region78: #{model_forward.1} parent=1 // pred_check
      _
    $region79: #{model_forward.1} parent=1 // pred_check_branch
      %1715 = sbr.rel (0) target = $region81
    $region80: #{model_forward.1} parent=1 // pred_region
      _
    $region81: #{model_forward.1} parent=1 // pred_fallthru
      _
    // Predicated region
    $region82: #{model_forward.1} parent=1 // pred_check
      _
    $region83: #{model_forward.1} parent=1 // pred_check_branch
      %1717 = sbr.rel (0) target = $region85
    $region84: #{model_forward.1} parent=1 // pred_region
      _
    $region85: #{model_forward.1} parent=1 // pred_fallthru
      _
    %1718 = vsyncpa [#allocation3], 1

</llo_original>
